<compile_context>
chip_gen: v7x
topology: tpu7x:2x2x1
jax: 0.10.0
libtpu: 0.0.40
codegen_flags: <defaults>
</compile_context>

<pallas_src>
import functools

import jax
import jax.numpy as jnp
from jax.experimental import pallas as pl
from jax.experimental.pallas import tpu as pltpu

# ---- model dimensions (small, synthetic) -----------------------------------
N_ITER = 3          # HMR IEF iterations -> len(x_hmr) == 3
THETA_DIM = 85      # cam(3) + pose(72) + shape(10)
FEAT_DIM = 32       # encoder feature dim (stand-in for ResNet-50's 2048)
HIDDEN = 32         # regressor hidden dim (stand-in for 1024)

LANE = 128          # TPU lane width
SUBLANE = 8         # TPU sublane group

FEAT_P = 128        # FEAT_DIM padded to a full lane group
HID_P = 128         # HIDDEN   padded to a full lane group
TH_P = 128          # THETA_DIM padded to a full lane group


def _round_up(n, m):
    return -(-n // m) * m


def _pad2(a, rows, cols):
    r, c = a.shape
    return jnp.pad(a, ((0, rows - r), (0, cols - c)))


# ---------------------------------------------------------------------------
# Kernel + cached pallas_call builder
# ---------------------------------------------------------------------------
@functools.lru_cache(maxsize=None)
def _build_hmr_loss_call(batch, half, in_dim_pad):
    """Builds (and caches) the pallas_call for a given (B, half, K_pad)."""
    del in_dim_pad  # only part of the cache key (shapes flow in via operands)
    inv_norm = 1.0 / float(batch * THETA_DIM)   # mean divisor uses REAL dims

    def kernel(xy_ref, ew_ref, w1f_ref, w1t_ref, w2_ref, w3_ref, bias_ref,
               loss_ref):
        xy = xy_ref[...]
        m_pad = xy.shape[0]

        # single [8,128] bias slab: row0=eb, row1=b1+theta0@w1t, row2=b2, row3=b3
        eb = bias_ref[0:1, :]
        b1p = bias_ref[1:2, :]
        # hoist the (m_pad,128) broadcasts out of the unrolled loop
        b2 = jnp.broadcast_to(bias_ref[2:3, :], (m_pad, HID_P))
        b3 = jnp.broadcast_to(bias_ref[3:4, :], (m_pad, TH_P))

        # ---- encoder: one matmul on the stacked [x; pad; y; pad] rows ------
        feat = jnp.dot(xy, ew_ref[...], preferred_element_type=jnp.float32)
        feat = jnp.maximum(feat + eb, 0.0)

        # ---- hoisted feat projection (theta0 term already folded into b1p) -
        h_feat = jnp.dot(feat, w1f_ref[...],
                         preferred_element_type=jnp.float32) + b1p

        w1t = w1t_ref[...]
        w2 = w2_ref[...]
        w3 = w3_ref[...]

        # ---- 3 IEF iterations (static unroll) on delta = theta - theta0 ----
        delta = None
        diff_acc = jnp.zeros((half, TH_P), jnp.float32)
        for _ in range(N_ITER):
            if delta is None:
                h = h_feat                                   # iter 0: delta==0
            else:
                h = h_feat + jnp.dot(delta, w1t,
                                     preferred_element_type=jnp.float32)
            h = jnp.maximum(h, 0.0)
            h = jnp.maximum(
                jnp.dot(h, w2, preferred_element_type=jnp.float32) + b2, 0.0)
            d = jnp.dot(h, w3, preferred_element_type=jnp.float32) + b3
            delta = d if delta is None else delta + d
            # x rows at [0, half), y rows at [half, 2*half): sublane-aligned
            # slices. Pad rows have identical (zero-input) deltas in both
            # halves -> diff exactly 0; padded theta lanes are exactly 0, so
            # the full-tile sum equals the sum over the B*85 real entries.
            diff_acc = diff_acc + jnp.abs(delta[0:half, :]
                                          - delta[half:2 * half, :])

        # one cross-lane reduction + one scalar scale (== sum of 3 means)
        loss_ref[0, 0] = jnp.sum(diff_acc) * inv_norm

    return pl.pallas_call(
        kernel,
        out_shape=jax.ShapeDtypeStruct((1, 1), jnp.float32),
        # Small shapes: everything fits VMEM whole; single invocation
        # (no grid), scalar loss lands in SMEM.
        in_specs=[pl.BlockSpec(memory_space=pltpu.MemorySpace.VMEM)] * 7,
        out_specs=pl.BlockSpec(memory_space=pltpu.MemorySpace.SMEM),
    )


# ---------------------------------------------------------------------------
# Parameters
# ---------------------------------------------------------------------------
def make_hmr_params(in_dim, key=jax.random.PRNGKey(0)):
    """Deterministic synthetic weights for the simplified HMR backbone
    (logical, unpadded shapes)."""
    ks = jax.random.split(key, 8)
    s = 0.02
    ew = s * jax.random.normal(ks[0], (in_dim, FEAT_DIM), jnp.float32)
    eb = s * jax.random.normal(ks[1], (1, FEAT_DIM), jnp.float32)
    w1 = s * jax.random.normal(ks[2], (FEAT_DIM + THETA_DIM, HIDDEN), jnp.float32)
    b1 = s * jax.random.normal(ks[3], (1, HIDDEN), jnp.float32)
    w2 = s * jax.random.normal(ks[4], (HIDDEN, HIDDEN), jnp.float32)
    b2 = s * jax.random.normal(ks[5], (1, HIDDEN), jnp.float32)
    w3 = s * jax.random.normal(ks[6], (HIDDEN, THETA_DIM), jnp.float32)
    b3 = s * jax.random.normal(ks[7], (1, THETA_DIM), jnp.float32)
    theta0 = jnp.zeros((1, THETA_DIM), jnp.float32)   # "mean theta" init
    return (ew, eb, w1, b1, w2, b2, w3, b3, theta0)


def prepare_hmr_padded_params(params, in_dim):
    """ONE-TIME (init-time) packing of weights for the kernel:
      * lane dims zero-padded to 128 (keeps padded lanes exactly zero through
        the ReLU/IEF chain -> loss value unchanged),
      * w1 split into feat / theta parts (feat projection hoisted in kernel),
      * theta0 @ w1_theta folded into b1 (skips the iteration-0 theta matmul),
      * all 1-row vectors stacked into a single [8,128] bias slab (1 DMA).
    TODO(synk): at real HMR dims, also cast the matmul operands to bf16 here
    (keep f32 accumulation in-kernel)."""
    ew, eb, w1, b1, w2, b2, w3, b3, theta0 = params
    in_dim_pad = _round_up(in_dim, LANE)

    w1_feat = w1[:FEAT_DIM, :]
    w1_theta = w1[FEAT_DIM:, :]
    b1_fold = b1 + theta0 @ w1_theta      # fold iter-0 theta matmul into bias

    bias = jnp.zeros((SUBLANE, LANE), jnp.float32)
    bias = bias.at[0, :FEAT_DIM].set(eb[0])
    bias = bias.at[1, :HIDDEN].set(b1_fold[0])
    bias = bias.at[2, :HIDDEN].set(b2[0])
    bias = bias.at[3, :THETA_DIM].set(b3[0])

    padded = (
        _pad2(ew, in_dim_pad, FEAT_P),
        _pad2(w1_feat, FEAT_P, HID_P),
        _pad2(w1_theta, TH_P, HID_P),
        _pad2(w2, HID_P, HID_P),
        _pad2(w3, HID_P, TH_P),
        bias,
    )
    return jax.tree_util.tree_map(jax.device_put, padded)


# ---------------------------------------------------------------------------
# Wrapper (jitted: reshape/pad/stack fuse into one dispatch)
# ---------------------------------------------------------------------------
def _hmr_loss_impl(x, y, padded_params):
    ew_p, w1f_p, w1t_p, w2_p, w3_p, bias_p = padded_params
    b = x.shape[0]
    in_dim_pad = ew_p.shape[0]

    xf = x.reshape(b, -1).astype(jnp.float32)
    yf = y.reshape(b, -1).astype(jnp.float32)
    in_dim = xf.shape[1]

    # x rows at [0,B), y rows at [half, half+B): y starts on a sublane-group
    # boundary so the in-kernel diff slices are tile-aligned. K padded to a
    # lane multiple.
    half = _round_up(max(b, SUBLANE), SUBLANE)
    xy = jnp.zeros((2 * half, in_dim_pad), jnp.float32)
    xy = xy.at[0:b, 0:in_dim].set(xf)
    xy = xy.at[half:half + b, 0:in_dim].set(yf)

    call = _build_hmr_loss_call(b, half, in_dim_pad)
    return call(xy, ew_p, w1f_p, w1t_p, w2_p, w3_p, bias_p)[0, 0]


hmr_loss = jax.jit(_hmr_loss_impl)


# ---------------------------------------------------------------------------
# Pure-JAX reference (unpadded) for a sanity check
# ---------------------------------------------------------------------------
def hmr_loss_ref(x, y, params):
    ew, eb, w1, b1, w2, b2, w3, b3, theta0 = params

    def encode(v):
        return jnp.maximum(v @ ew + eb, 0.0)

    def regress(feat):
        theta = jnp.broadcast_to(theta0, (feat.shape[0], THETA_DIM))
        outs = []
        for _ in range(N_ITER):
            inp = jnp.concatenate([feat, theta], axis=1)
            h = jnp.maximum(inp @ w1 + b1, 0.0)
            h = jnp.maximum(h @ w2 + b2, 0.0)
            theta = theta + (h @ w3 + b3)
            outs.append(theta)
        return outs

    b = x.shape[0]
    xf = x.reshape(b, -1).astype(jnp.float32)
    yf = y.reshape(b, -1).astype(jnp.float32)
    tx, ty = regress(encode(xf)), regress(encode(yf))
    return sum(jnp.mean(jnp.abs(a - c)) for a, c in zip(tx, ty))


if __name__ == "__main__":
    key = jax.random.PRNGKey(0)
    kx, ky, kw = jax.random.split(key, 3)

    B, C, H, W = 2, 4, 16, 16          # small NCHW inputs
    x = jax.random.normal(kx, (B, C, H, W), jnp.float32)
    y = jax.random.normal(ky, (B, C, H, W), jnp.float32)

    params = make_hmr_params(C * H * W, kw)
    padded = jax.block_until_ready(
        prepare_hmr_padded_params(params, C * H * W))   # one-time packing

    loss = jax.block_until_ready(hmr_loss(x, y, padded))
    ref = jax.block_until_ready(hmr_loss_ref(x, y, params))

    assert jnp.isfinite(loss), "loss is not finite"
    assert abs(float(loss) - float(ref)) < 1e-5 + 1e-3 * abs(float(ref)), (
        float(loss), float(ref))
    print("KERNEL_OK")
</pallas_src>

<mosaic_0001>
module attributes {stable_mosaic.version = 11 : i64} {
  func.func @kernel(%arg0: memref<16x1024xf32, #tpu.memory_space<vmem>>, %arg1: memref<1024x128xf32, #tpu.memory_space<vmem>>, %arg2: memref<128x128xf32, #tpu.memory_space<vmem>>, %arg3: memref<128x128xf32, #tpu.memory_space<vmem>>, %arg4: memref<128x128xf32, #tpu.memory_space<vmem>>, %arg5: memref<128x128xf32, #tpu.memory_space<vmem>>, %arg6: memref<8x128xf32, #tpu.memory_space<vmem>>, %arg7: memref<1x1xf32, #tpu.memory_space<smem>>) attributes {dimension_semantics = [], scalar_prefetch = 0 : i64, scratch_operands = 0 : i64, tpu.core_type = #tpu.core_type<tc>} {
    %c0 = arith.constant 0 : index
    %c0_0 = arith.constant 0 : index
    %0 = vector.load %arg0[%c0, %c0_0] : memref<16x1024xf32, #tpu.memory_space<vmem>>, vector<16x1024xf32>
    %c0_1 = arith.constant 0 : index
    %c0_2 = arith.constant 0 : index
    %1 = vector.load %arg6[%c0_1, %c0_2] : memref<8x128xf32, #tpu.memory_space<vmem>>, vector<1x128xf32>
    %c1 = arith.constant 1 : index
    %c0_3 = arith.constant 0 : index
    %2 = vector.load %arg6[%c1, %c0_3] : memref<8x128xf32, #tpu.memory_space<vmem>>, vector<1x128xf32>
    %c2 = arith.constant 2 : index
    %c0_4 = arith.constant 0 : index
    %3 = vector.load %arg6[%c2, %c0_4] : memref<8x128xf32, #tpu.memory_space<vmem>>, vector<1x128xf32>
    %4 = vector.shape_cast %3 : vector<1x128xf32> to vector<1x128xf32>
    %5 = vector.broadcast %4 : vector<1x128xf32> to vector<16x128xf32>
    %c3 = arith.constant 3 : index
    %c0_5 = arith.constant 0 : index
    %6 = vector.load %arg6[%c3, %c0_5] : memref<8x128xf32, #tpu.memory_space<vmem>>, vector<1x128xf32>
    %7 = vector.shape_cast %6 : vector<1x128xf32> to vector<1x128xf32>
    %8 = vector.broadcast %7 : vector<1x128xf32> to vector<16x128xf32>
    %c0_6 = arith.constant 0 : index
    %c0_7 = arith.constant 0 : index
    %9 = vector.load %arg1[%c0_6, %c0_7] : memref<1024x128xf32, #tpu.memory_space<vmem>>, vector<1024x128xf32>
    %cst = arith.constant dense<0.000000e+00> : vector<16x128xf32>
    %10 = tpu.matmul %0, %9, %cst {dimension_numbers = #tpu.dot_dimension_numbers<[1], [0], [0], [1], [0, 0, 1, 1], [], []>} : vector<16x1024xf32>, vector<1024x128xf32>, vector<16x128xf32> -> vector<16x128xf32>
    %11 = vector.broadcast %1 : vector<1x128xf32> to vector<16x128xf32>
    %12 = arith.addf %10, %11 : vector<16x128xf32>
    %cst_8 = arith.constant 0.000000e+00 : f32
    %13 = vector.broadcast %cst_8 : f32 to vector<16x128xf32>
    %14 = arith.maximumf %12, %13 : vector<16x128xf32>
    %c0_9 = arith.constant 0 : index
    %c0_10 = arith.constant 0 : index
    %15 = vector.load %arg2[%c0_9, %c0_10] : memref<128x128xf32, #tpu.memory_space<vmem>>, vector<128x128xf32>
    %cst_11 = arith.constant dense<0.000000e+00> : vector<16x128xf32>
    %16 = tpu.matmul %14, %15, %cst_11 {dimension_numbers = #tpu.dot_dimension_numbers<[1], [0], [0], [1], [0, 0, 1, 1], [], []>} : vector<16x128xf32>, vector<128x128xf32>, vector<16x128xf32> -> vector<16x128xf32>
    %17 = vector.broadcast %2 : vector<1x128xf32> to vector<16x128xf32>
    %18 = arith.addf %16, %17 : vector<16x128xf32>
    %c0_12 = arith.constant 0 : index
    %c0_13 = arith.constant 0 : index
    %19 = vector.load %arg3[%c0_12, %c0_13] : memref<128x128xf32, #tpu.memory_space<vmem>>, vector<128x128xf32>
    %c0_14 = arith.constant 0 : index
    %c0_15 = arith.constant 0 : index
    %20 = vector.load %arg4[%c0_14, %c0_15] : memref<128x128xf32, #tpu.memory_space<vmem>>, vector<128x128xf32>
    %c0_16 = arith.constant 0 : index
    %c0_17 = arith.constant 0 : index
    %21 = vector.load %arg5[%c0_16, %c0_17] : memref<128x128xf32, #tpu.memory_space<vmem>>, vector<128x128xf32>
    %cst_18 = arith.constant 0.000000e+00 : f32
    %22 = vector.broadcast %cst_18 : f32 to vector<8x128xf32>
    %cst_19 = arith.constant 0.000000e+00 : f32
    %23 = vector.broadcast %cst_19 : f32 to vector<16x128xf32>
    %24 = arith.maximumf %18, %23 : vector<16x128xf32>
    %cst_20 = arith.constant dense<0.000000e+00> : vector<16x128xf32>
    %25 = tpu.matmul %24, %20, %cst_20 {dimension_numbers = #tpu.dot_dimension_numbers<[1], [0], [0], [1], [0, 0, 1, 1], [], []>} : vector<16x128xf32>, vector<128x128xf32>, vector<16x128xf32> -> vector<16x128xf32>
    %26 = arith.addf %25, %5 : vector<16x128xf32>
    %cst_21 = arith.constant 0.000000e+00 : f32
    %27 = vector.broadcast %cst_21 : f32 to vector<16x128xf32>
    %28 = arith.maximumf %26, %27 : vector<16x128xf32>
    %cst_22 = arith.constant dense<0.000000e+00> : vector<16x128xf32>
    %29 = tpu.matmul %28, %21, %cst_22 {dimension_numbers = #tpu.dot_dimension_numbers<[1], [0], [0], [1], [0, 0, 1, 1], [], []>} : vector<16x128xf32>, vector<128x128xf32>, vector<16x128xf32> -> vector<16x128xf32>
    %30 = arith.addf %29, %8 : vector<16x128xf32>
    %31 = vector.extract_strided_slice %30 {offsets = [0, 0], sizes = [8, 128], strides = [1, 1]} : vector<16x128xf32> to vector<8x128xf32>
    %32 = vector.extract_strided_slice %30 {offsets = [8, 0], sizes = [8, 128], strides = [1, 1]} : vector<16x128xf32> to vector<8x128xf32>
    %33 = arith.subf %31, %32 : vector<8x128xf32>
    %34 = math.absf %33 : vector<8x128xf32>
    %35 = arith.addf %22, %34 : vector<8x128xf32>
    %cst_23 = arith.constant dense<0.000000e+00> : vector<16x128xf32>
    %36 = tpu.matmul %30, %19, %cst_23 {dimension_numbers = #tpu.dot_dimension_numbers<[1], [0], [0], [1], [0, 0, 1, 1], [], []>} : vector<16x128xf32>, vector<128x128xf32>, vector<16x128xf32> -> vector<16x128xf32>
    %37 = arith.addf %18, %36 : vector<16x128xf32>
    %cst_24 = arith.constant 0.000000e+00 : f32
    %38 = vector.broadcast %cst_24 : f32 to vector<16x128xf32>
    %39 = arith.maximumf %37, %38 : vector<16x128xf32>
    %cst_25 = arith.constant dense<0.000000e+00> : vector<16x128xf32>
    %40 = tpu.matmul %39, %20, %cst_25 {dimension_numbers = #tpu.dot_dimension_numbers<[1], [0], [0], [1], [0, 0, 1, 1], [], []>} : vector<16x128xf32>, vector<128x128xf32>, vector<16x128xf32> -> vector<16x128xf32>
    %41 = arith.addf %40, %5 : vector<16x128xf32>
    %cst_26 = arith.constant 0.000000e+00 : f32
    %42 = vector.broadcast %cst_26 : f32 to vector<16x128xf32>
    %43 = arith.maximumf %41, %42 : vector<16x128xf32>
    %cst_27 = arith.constant dense<0.000000e+00> : vector<16x128xf32>
    %44 = tpu.matmul %43, %21, %cst_27 {dimension_numbers = #tpu.dot_dimension_numbers<[1], [0], [0], [1], [0, 0, 1, 1], [], []>} : vector<16x128xf32>, vector<128x128xf32>, vector<16x128xf32> -> vector<16x128xf32>
    %45 = arith.addf %44, %8 : vector<16x128xf32>
    %46 = arith.addf %30, %45 : vector<16x128xf32>
    %47 = vector.extract_strided_slice %46 {offsets = [0, 0], sizes = [8, 128], strides = [1, 1]} : vector<16x128xf32> to vector<8x128xf32>
    %48 = vector.extract_strided_slice %46 {offsets = [8, 0], sizes = [8, 128], strides = [1, 1]} : vector<16x128xf32> to vector<8x128xf32>
    %49 = arith.subf %47, %48 : vector<8x128xf32>
    %50 = math.absf %49 : vector<8x128xf32>
    %51 = arith.addf %35, %50 : vector<8x128xf32>
    %cst_28 = arith.constant dense<0.000000e+00> : vector<16x128xf32>
    %52 = tpu.matmul %46, %19, %cst_28 {dimension_numbers = #tpu.dot_dimension_numbers<[1], [0], [0], [1], [0, 0, 1, 1], [], []>} : vector<16x128xf32>, vector<128x128xf32>, vector<16x128xf32> -> vector<16x128xf32>
    %53 = arith.addf %18, %52 : vector<16x128xf32>
    %cst_29 = arith.constant 0.000000e+00 : f32
    %54 = vector.broadcast %cst_29 : f32 to vector<16x128xf32>
    %55 = arith.maximumf %53, %54 : vector<16x128xf32>
    %cst_30 = arith.constant dense<0.000000e+00> : vector<16x128xf32>
    %56 = tpu.matmul %55, %20, %cst_30 {dimension_numbers = #tpu.dot_dimension_numbers<[1], [0], [0], [1], [0, 0, 1, 1], [], []>} : vector<16x128xf32>, vector<128x128xf32>, vector<16x128xf32> -> vector<16x128xf32>
    %57 = arith.addf %56, %5 : vector<16x128xf32>
    %cst_31 = arith.constant 0.000000e+00 : f32
    %58 = vector.broadcast %cst_31 : f32 to vector<16x128xf32>
    %59 = arith.maximumf %57, %58 : vector<16x128xf32>
    %cst_32 = arith.constant dense<0.000000e+00> : vector<16x128xf32>
    %60 = tpu.matmul %59, %21, %cst_32 {dimension_numbers = #tpu.dot_dimension_numbers<[1], [0], [0], [1], [0, 0, 1, 1], [], []>} : vector<16x128xf32>, vector<128x128xf32>, vector<16x128xf32> -> vector<16x128xf32>
    %61 = arith.addf %60, %8 : vector<16x128xf32>
    %62 = arith.addf %46, %61 : vector<16x128xf32>
    %63 = vector.extract_strided_slice %62 {offsets = [0, 0], sizes = [8, 128], strides = [1, 1]} : vector<16x128xf32> to vector<8x128xf32>
    %64 = vector.extract_strided_slice %62 {offsets = [8, 0], sizes = [8, 128], strides = [1, 1]} : vector<16x128xf32> to vector<8x128xf32>
    %65 = arith.subf %63, %64 : vector<8x128xf32>
    %66 = math.absf %65 : vector<8x128xf32>
    %67 = arith.addf %51, %66 : vector<8x128xf32>
    %68 = vector.shape_cast %67 : vector<8x128xf32> to vector<1x8x128xf32>
    %cst_33 = arith.constant dense<0.000000e+00> : vector<1xf32>
    %69 = vector.multi_reduction <add>, %68, %cst_33 [1, 2] : vector<1x8x128xf32> to vector<1xf32>
    %70 = vector.shape_cast %69 : vector<1xf32> to vector<1x1x1xf32>
    %71 = vector.extract %70[0, 0, 0] : f32 from vector<1x1x1xf32>
    %cst_34 = arith.constant 0.00588235306 : f32
    %72 = arith.mulf %71, %cst_34 : f32
    %c0_35 = arith.constant 0 : index
    %c0_36 = arith.constant 0 : index
    %73 = memref.load %arg7[%c0_35, %c0_36] : memref<1x1xf32, #tpu.memory_space<smem>>
    memref.store %72, %arg7[%c0_35, %c0_36] : memref<1x1xf32, #tpu.memory_space<smem>>
    return
  }
}

</mosaic_0001>

<llo_original>
// kernel: _hmr_loss_impl.1
$region0: #{_hmr_loss_impl.1}
  #allocation0 [shape = 'u32[]', space=smem, size = 0x4, offset = 0x4, fixed_abs, tag = 'smem constant byte address 0x4 - core index']
  #allocation1 [shape = 'u32[144,128]{1,0:T(1,128)}', space=vmem, size = 0x12000, scoped, tag = 'internal scratch']
  %s0 = inlined_call_operand.vmem [shape: f32[16,1024], index: 0, kind: input, shape index: {}]
  %s1 = inlined_call_operand.hbm [shape: f32[1024,128], index: 1, kind: input, shape index: {}]
  %s2 = inlined_call_operand.vmem [shape: f32[128,128], index: 2, kind: input, shape index: {}]
  %s3 = inlined_call_operand.vmem [shape: f32[128,128], index: 3, kind: input, shape index: {}]
  %s4 = inlined_call_operand.vmem [shape: f32[128,128], index: 4, kind: input, shape index: {}]
  %s5 = inlined_call_operand.hbm [shape: f32[128,128], index: 5, kind: input, shape index: {}]
  %s6 = inlined_call_operand.vmem [shape: f32[8,128], index: 6, kind: input, shape index: {}]
  %s7 = inlined_call_operand.hbm [shape: f32[1,1], index: 7, kind: output, shape index: {}]
  %s8 = sld [smem:[#allocation0]]
  $region46: #{_hmr_loss_impl.1} parent=0
    _
  %s10 = ssub.s32 1, %s8
  %s11 = scalar_select 0, %s10, %s8
  $region1: #{_hmr_loss_impl.1} parent=0
    #allocation2 [shape = 'u8[524288]{0}', space=vmem, size = 0x80000, scoped, tag = 'input window, operand 1, single buffered']
    #allocation3 [shape = 's32[1]{0}', space=sflag, size = 0x4, scoped, tag = 'scoped memory for _hmr_loss_impl.1']
    #allocation4 [shape = 's32[1]{0}', space=sflag, size = 0x4, scoped, tag = 'scoped memory for _hmr_loss_impl.1']
    #allocation5 [shape = 'u8[65536]{0}', space=vmem, size = 0x10000, scoped, tag = 'input window, operand 5, single buffered']
    #allocation6 [shape = 's32[1]{0}', space=sflag, size = 0x4, scoped, tag = 'scoped memory for _hmr_loss_impl.1']
    #allocation7 [shape = 'u8[512]{0}', space=smem, size = 0x200, scoped, tag = 'output window, operand 0, single buffered']
    %12 = vsyncpa [#allocation3], 0
    %13 = vsyncpa [#allocation6], 0
    %14 = vsyncpa [#allocation4], 0
    // Predicated region
    $region2: #{_hmr_loss_impl.1} parent=1 // pred_check
      _
    $region3: #{_hmr_loss_impl.1} parent=1 // pred_check_branch
      %16 = sbr.rel (0) target = $region5
    $region4: #{_hmr_loss_impl.1} parent=1 // pred_region
      _
    $region5: #{_hmr_loss_impl.1} parent=1 // pred_fallthru
      _
    // Predicated region
    $region6: #{_hmr_loss_impl.1} parent=1 // pred_check
      _
    $region7: #{_hmr_loss_impl.1} parent=1 // pred_check_branch
      %18 = sbr.rel (0) target = $region9
    $region8: #{_hmr_loss_impl.1} parent=1 // pred_region
      %s20 = ssub.s32 16384, 16384
      %21 = vsyncadd [#allocation3], %s20
      %s22 = sshll.u32 [#allocation2], 4
      %s23 = int_to_ptr.vmem [resolvable:$true] %s22
      %28 = dma.hbm_to_vmem [thread:$0]  %s1, 16384, %s23, [#allocation3], 128, 128, 8
    $region9: #{_hmr_loss_impl.1} parent=1 // pred_fallthru
      _
    // Predicated region
    $region10: #{_hmr_loss_impl.1} parent=1 // pred_check
      _
    $region11: #{_hmr_loss_impl.1} parent=1 // pred_check_branch
      %30 = sbr.rel (0) target = $region13
    $region12: #{_hmr_loss_impl.1} parent=1 // pred_region
      _
    $region13: #{_hmr_loss_impl.1} parent=1 // pred_fallthru
      _
    // Predicated region
    $region14: #{_hmr_loss_impl.1} parent=1 // pred_check
      _
    $region15: #{_hmr_loss_impl.1} parent=1 // pred_check_branch
      %32 = sbr.rel (0) target = $region17
    $region16: #{_hmr_loss_impl.1} parent=1 // pred_region
      _
    $region17: #{_hmr_loss_impl.1} parent=1 // pred_fallthru
      _
    // Predicated region
    $region18: #{_hmr_loss_impl.1} parent=1 // pred_check
      _
    $region19: #{_hmr_loss_impl.1} parent=1 // pred_check_branch
      %34 = sbr.rel (0) target = $region21
    $region20: #{_hmr_loss_impl.1} parent=1 // pred_region
      _
    $region21: #{_hmr_loss_impl.1} parent=1 // pred_fallthru
      _
    // Predicated region
    $region22: #{_hmr_loss_impl.1} parent=1 // pred_check
      _
    $region23: #{_hmr_loss_impl.1} parent=1 // pred_check_branch
      %36 = sbr.rel (0) target = $region25
    $region24: #{_hmr_loss_impl.1} parent=1 // pred_region
      %s38 = ssub.s32 2048, 2048
      %39 = vsyncadd [#allocation6], %s38
      %s40 = sshll.u32 [#allocation5], 4
      %s41 = int_to_ptr.vmem [resolvable:$true] %s40
      %46 = dma.hbm_to_vmem [thread:$0]  %s5, 2048, %s41, [#allocation6], 128, 128, 8
    $region25: #{_hmr_loss_impl.1} parent=1 // pred_fallthru
      _
    // Predicated region
    $region26: #{_hmr_loss_impl.1} parent=1 // pred_check
      _
    $region27: #{_hmr_loss_impl.1} parent=1 // pred_check_branch
      %48 = sbr.rel (0) target = $region29
    $region28: #{_hmr_loss_impl.1} parent=1 // pred_region
      _
    $region29: #{_hmr_loss_impl.1} parent=1 // pred_fallthru
      _
    // Predicated region
    $region30: #{_hmr_loss_impl.1} parent=1 // pred_check
      _
    $region31: #{_hmr_loss_impl.1} parent=1 // pred_check_branch
      %50 = sbr.rel (0) target = $region33
    $region32: #{_hmr_loss_impl.1} parent=1 // pred_region
      %51 = dma.done [#allocation3], 16384
    $region33: #{_hmr_loss_impl.1} parent=1 // pred_fallthru
      _
    // Predicated region
    $region34: #{_hmr_loss_impl.1} parent=1 // pred_check
      _
    $region35: #{_hmr_loss_impl.1} parent=1 // pred_check_branch
      %53 = sbr.rel (0) target = $region37
    $region36: #{_hmr_loss_impl.1} parent=1 // pred_region
      %54 = dma.done [#allocation6], 2048
    $region37: #{_hmr_loss_impl.1} parent=1 // pred_fallthru
      _
    %v55 = vld [vmem:[%s0] sm:$0xff]
    %v56 = vld [vmem:[%s0 + $0x8] sm:$0xff]
    %v57 = vld [vmem:[%s0 + $0x10] sm:$0xff]
    %v58 = vld [vmem:[%s0 + $0x18] sm:$0xff]
    %v59 = vld [vmem:[%s0 + $0x20] sm:$0xff]
    %v60 = vld [vmem:[%s0 + $0x28] sm:$0xff]
    %v61 = vld [vmem:[%s0 + $0x30] sm:$0xff]
    %v62 = vld [vmem:[%s0 + $0x38] sm:$0xff]
    %v63 = vld [vmem:[%s0 + $0x40] sm:$0xff]
    %v64 = vld [vmem:[%s0 + $0x48] sm:$0xff]
    %v65 = vld [vmem:[%s0 + $0x50] sm:$0xff]
    %v66 = vld [vmem:[%s0 + $0x58] sm:$0xff]
    %v67 = vld [vmem:[%s0 + $0x60] sm:$0xff]
    %v68 = vld [vmem:[%s0 + $0x68] sm:$0xff]
    %v69 = vld [vmem:[%s0 + $0x70] sm:$0xff]
    %v70 = vld [vmem:[%s0 + $0x78] sm:$0xff]
    %v71 = vld [vmem:[%s6] sm:$0x1]
    %v72 = vld [vmem:[%s6 + $0x1] sm:$0x1]
    %v73 = vld [vmem:[%s6 + $0x2] sm:$0x1]
    %v74 = vlaneseq
    %v75 = vshrl.u32 %v74, 7
    %v76 = vsub.s32 0, %v75
    %v77 = vrot.slane %v73, %v76
    %v78 = vld [vmem:[%s6 + $0x3] sm:$0x1]
    %v79 = vlaneseq
    %v80 = vshrl.u32 %v79, 7
    %v81 = vsub.s32 0, %v80
    %v82 = vrot.slane %v78, %v81
    %v83 = vld [vmem:[#allocation2] sm:$0xff]
    %v84 = vld [vmem:[#allocation2 + $0x8] sm:$0xff]
    %v85 = vld [vmem:[#allocation2 + $0x10] sm:$0xff]
    %v86 = vld [vmem:[#allocation2 + $0x18] sm:$0xff]
    %v87 = vld [vmem:[#allocation2 + $0x20] sm:$0xff]
    %v88 = vld [vmem:[#allocation2 + $0x28] sm:$0xff]
    %v89 = vld [vmem:[#allocation2 + $0x30] sm:$0xff]
    %v90 = vld [vmem:[#allocation2 + $0x38] sm:$0xff]
    %v91 = vld [vmem:[#allocation2 + $0x40] sm:$0xff]
    %v92 = vld [vmem:[#allocation2 + $0x48] sm:$0xff]
    %v93 = vld [vmem:[#allocation2 + $0x50] sm:$0xff]
    %v94 = vld [vmem:[#allocation2 + $0x58] sm:$0xff]
    %v95 = vld [vmem:[#allocation2 + $0x60] sm:$0xff]
    %v96 = vld [vmem:[#allocation2 + $0x68] sm:$0xff]
    %v97 = vld [vmem:[#allocation2 + $0x70] sm:$0xff]
    %v98 = vld [vmem:[#allocation2 + $0x78] sm:$0xff]
    %v99 = vld [vmem:[#allocation2 + $0x80] sm:$0xff]
    %v100 = vld [vmem:[#allocation2 + $0x88] sm:$0xff]
    %v101 = vld [vmem:[#allocation2 + $0x90] sm:$0xff]
    %v102 = vld [vmem:[#allocation2 + $0x98] sm:$0xff]
    %v103 = vld [vmem:[#allocation2 + $0xa0] sm:$0xff]
    %v104 = vld [vmem:[#allocation2 + $0xa8] sm:$0xff]
    %v105 = vld [vmem:[#allocation2 + $0xb0] sm:$0xff]
    %v106 = vld [vmem:[#allocation2 + $0xb8] sm:$0xff]
    %v107 = vld [vmem:[#allocation2 + $0xc0] sm:$0xff]
    %v108 = vld [vmem:[#allocation2 + $0xc8] sm:$0xff]
    %v109 = vld [vmem:[#allocation2 + $0xd0] sm:$0xff]
    %v110 = vld [vmem:[#allocation2 + $0xd8] sm:$0xff]
    %v111 = vld [vmem:[#allocation2 + $0xe0] sm:$0xff]
    %v112 = vld [vmem:[#allocation2 + $0xe8] sm:$0xff]
    %v113 = vld [vmem:[#allocation2 + $0xf0] sm:$0xff]
    %v114 = vld [vmem:[#allocation2 + $0xf8] sm:$0xff]
    %v115 = vld [vmem:[#allocation2 + $0x100] sm:$0xff]
    %v116 = vld [vmem:[#allocation2 + $0x108] sm:$0xff]
    %v117 = vld [vmem:[#allocation2 + $0x110] sm:$0xff]
    %v118 = vld [vmem:[#allocation2 + $0x118] sm:$0xff]
    %v119 = vld [vmem:[#allocation2 + $0x120] sm:$0xff]
    %v120 = vld [vmem:[#allocation2 + $0x128] sm:$0xff]
    %v121 = vld [vmem:[#allocation2 + $0x130] sm:$0xff]
    %v122 = vld [vmem:[#allocation2 + $0x138] sm:$0xff]
    %v123 = vld [vmem:[#allocation2 + $0x140] sm:$0xff]
    %v124 = vld [vmem:[#allocation2 + $0x148] sm:$0xff]
    %v125 = vld [vmem:[#allocation2 + $0x150] sm:$0xff]
    %v126 = vld [vmem:[#allocation2 + $0x158] sm:$0xff]
    %v127 = vld [vmem:[#allocation2 + $0x160] sm:$0xff]
    %v128 = vld [vmem:[#allocation2 + $0x168] sm:$0xff]
    %v129 = vld [vmem:[#allocation2 + $0x170] sm:$0xff]
    %v130 = vld [vmem:[#allocation2 + $0x178] sm:$0xff]
    %v131 = vld [vmem:[#allocation2 + $0x180] sm:$0xff]
    %v132 = vld [vmem:[#allocation2 + $0x188] sm:$0xff]
    %v133 = vld [vmem:[#allocation2 + $0x190] sm:$0xff]
    %v134 = vld [vmem:[#allocation2 + $0x198] sm:$0xff]
    %v135 = vld [vmem:[#allocation2 + $0x1a0] sm:$0xff]
    %v136 = vld [vmem:[#allocation2 + $0x1a8] sm:$0xff]
    %v137 = vld [vmem:[#allocation2 + $0x1b0] sm:$0xff]
    %v138 = vld [vmem:[#allocation2 + $0x1b8] sm:$0xff]
    %v139 = vld [vmem:[#allocation2 + $0x1c0] sm:$0xff]
    %v140 = vld [vmem:[#allocation2 + $0x1c8] sm:$0xff]
    %v141 = vld [vmem:[#allocation2 + $0x1d0] sm:$0xff]
    %v142 = vld [vmem:[#allocation2 + $0x1d8] sm:$0xff]
    %v143 = vld [vmem:[#allocation2 + $0x1e0] sm:$0xff]
    %v144 = vld [vmem:[#allocation2 + $0x1e8] sm:$0xff]
    %v145 = vld [vmem:[#allocation2 + $0x1f0] sm:$0xff]
    %v146 = vld [vmem:[#allocation2 + $0x1f8] sm:$0xff]
    %v147 = vld [vmem:[#allocation2 + $0x200] sm:$0xff]
    %v148 = vld [vmem:[#allocation2 + $0x208] sm:$0xff]
    %v149 = vld [vmem:[#allocation2 + $0x210] sm:$0xff]
    %v150 = vld [vmem:[#allocation2 + $0x218] sm:$0xff]
    %v151 = vld [vmem:[#allocation2 + $0x220] sm:$0xff]
    %v152 = vld [vmem:[#allocation2 + $0x228] sm:$0xff]
    %v153 = vld [vmem:[#allocation2 + $0x230] sm:$0xff]
    %v154 = vld [vmem:[#allocation2 + $0x238] sm:$0xff]
    %v155 = vld [vmem:[#allocation2 + $0x240] sm:$0xff]
    %v156 = vld [vmem:[#allocation2 + $0x248] sm:$0xff]
    %v157 = vld [vmem:[#allocation2 + $0x250] sm:$0xff]
    %v158 = vld [vmem:[#allocation2 + $0x258] sm:$0xff]
    %v159 = vld [vmem:[#allocation2 + $0x260] sm:$0xff]
    %v160 = vld [vmem:[#allocation2 + $0x268] sm:$0xff]
    %v161 = vld [vmem:[#allocation2 + $0x270] sm:$0xff]
    %v162 = vld [vmem:[#allocation2 + $0x278] sm:$0xff]
    %v163 = vld [vmem:[#allocation2 + $0x280] sm:$0xff]
    %v164 = vld [vmem:[#allocation2 + $0x288] sm:$0xff]
    %v165 = vld [vmem:[#allocation2 + $0x290] sm:$0xff]
    %v166 = vld [vmem:[#allocation2 + $0x298] sm:$0xff]
    %v167 = vld [vmem:[#allocation2 + $0x2a0] sm:$0xff]
    %v168 = vld [vmem:[#allocation2 + $0x2a8] sm:$0xff]
    %v169 = vld [vmem:[#allocation2 + $0x2b0] sm:$0xff]
    %v170 = vld [vmem:[#allocation2 + $0x2b8] sm:$0xff]
    %v171 = vld [vmem:[#allocation2 + $0x2c0] sm:$0xff]
    %v172 = vld [vmem:[#allocation2 + $0x2c8] sm:$0xff]
    %v173 = vld [vmem:[#allocation2 + $0x2d0] sm:$0xff]
    %v174 = vld [vmem:[#allocation2 + $0x2d8] sm:$0xff]
    %v175 = vld [vmem:[#allocation2 + $0x2e0] sm:$0xff]
    %v176 = vld [vmem:[#allocation2 + $0x2e8] sm:$0xff]
    %v177 = vld [vmem:[#allocation2 + $0x2f0] sm:$0xff]
    %v178 = vld [vmem:[#allocation2 + $0x2f8] sm:$0xff]
    %v179 = vld [vmem:[#allocation2 + $0x300] sm:$0xff]
    %v180 = vld [vmem:[#allocation2 + $0x308] sm:$0xff]
    %v181 = vld [vmem:[#allocation2 + $0x310] sm:$0xff]
    %v182 = vld [vmem:[#allocation2 + $0x318] sm:$0xff]
    %v183 = vld [vmem:[#allocation2 + $0x320] sm:$0xff]
    %v184 = vld [vmem:[#allocation2 + $0x328] sm:$0xff]
    %v185 = vld [vmem:[#allocation2 + $0x330] sm:$0xff]
    %v186 = vld [vmem:[#allocation2 + $0x338] sm:$0xff]
    %v187 = vld [vmem:[#allocation2 + $0x340] sm:$0xff]
    %v188 = vld [vmem:[#allocation2 + $0x348] sm:$0xff]
    %v189 = vld [vmem:[#allocation2 + $0x350] sm:$0xff]
    %v190 = vld [vmem:[#allocation2 + $0x358] sm:$0xff]
    %v191 = vld [vmem:[#allocation2 + $0x360] sm:$0xff]
    %v192 = vld [vmem:[#allocation2 + $0x368] sm:$0xff]
    %v193 = vld [vmem:[#allocation2 + $0x370] sm:$0xff]
    %v194 = vld [vmem:[#allocation2 + $0x378] sm:$0xff]
    %v195 = vld [vmem:[#allocation2 + $0x380] sm:$0xff]
    %v196 = vld [vmem:[#allocation2 + $0x388] sm:$0xff]
    %v197 = vld [vmem:[#allocation2 + $0x390] sm:$0xff]
    %v198 = vld [vmem:[#allocation2 + $0x398] sm:$0xff]
    %v199 = vld [vmem:[#allocation2 + $0x3a0] sm:$0xff]
    %v200 = vld [vmem:[#allocation2 + $0x3a8] sm:$0xff]
    %v201 = vld [vmem:[#allocation2 + $0x3b0] sm:$0xff]
    %v202 = vld [vmem:[#allocation2 + $0x3b8] sm:$0xff]
    %v203 = vld [vmem:[#allocation2 + $0x3c0] sm:$0xff]
    %v204 = vld [vmem:[#allocation2 + $0x3c8] sm:$0xff]
    %v205 = vld [vmem:[#allocation2 + $0x3d0] sm:$0xff]
    %v206 = vld [vmem:[#allocation2 + $0x3d8] sm:$0xff]
    %v207 = vld [vmem:[#allocation2 + $0x3e0] sm:$0xff]
    %v208 = vld [vmem:[#allocation2 + $0x3e8] sm:$0xff]
    %v209 = vld [vmem:[#allocation2 + $0x3f0] sm:$0xff]
    %v210 = vld [vmem:[#allocation2 + $0x3f8] sm:$0xff]
    %v211 = vlaneseq
    %v212 = vshrl.u32 %v211, 7
    %v213 = vsub.s32 0, %v212
    %v214 = vrot.slane %v71, %v213
    %215 = vmatprep.subr.mxu0 0.0
    %216 = vmatpush1.msra.mxu0 %v83
    %217 = vmatprep.subr.mxu0 0.0
    %218 = vmatpush1.msra.mxu0 %v84
    %219 = vmatprep.subr.mxu0 0.0
    %220 = vmatpush1.msra.mxu0 %v85
    %221 = vmatprep.subr.mxu0 0.0
    %222 = vmatpush1.msra.mxu0 %v86
    %223 = vmatprep.subr.mxu0 0.0
    %224 = vmatpush1.msra.mxu0 %v87
    %225 = vmatprep.subr.mxu0 0.0
    %226 = vmatpush1.msra.mxu0 %v88
    %227 = vmatprep.subr.mxu0 0.0
    %228 = vmatpush1.msra.mxu0 %v89
    %229 = vmatprep.subr.mxu0 0.0
    %230 = vmatpush1.msra.mxu0 %v90
    %231 = vmatprep.subr.mxu0 0.0
    %232 = vmatpush1.msra.mxu0 %v91
    %233 = vmatprep.subr.mxu0 0.0
    %234 = vmatpush1.msra.mxu0 %v92
    %235 = vmatprep.subr.mxu0 0.0
    %236 = vmatpush1.msra.mxu0 %v93
    %237 = vmatprep.subr.mxu0 0.0
    %238 = vmatpush1.msra.mxu0 %v94
    %239 = vmatprep.subr.mxu0 0.0
    %240 = vmatpush1.msra.mxu0 %v95
    %241 = vmatprep.subr.mxu0 0.0
    %242 = vmatpush1.msra.mxu0 %v96
    %243 = vmatprep.subr.mxu0 0.0
    %244 = vmatpush1.msra.mxu0 %v97
    %245 = vmatprep.subr.mxu0 0.0
    %246 = vmatpush1.msra.mxu0 %v98
    %247 = vmatprep.subr.mxu0 0.0
    %248 = vmatpush1.msra.mxu0 %v99
    %249 = vmatprep.subr.mxu0 0.0
    %250 = vmatpush1.msra.mxu0 %v100
    %251 = vmatprep.subr.mxu0 0.0
    %252 = vmatpush1.msra.mxu0 %v101
    %253 = vmatprep.subr.mxu0 0.0
    %254 = vmatpush1.msra.mxu0 %v102
    %255 = vmatprep.subr.mxu0 0.0
    %256 = vmatpush1.msra.mxu0 %v103
    %257 = vmatprep.subr.mxu0 0.0
    %258 = vmatpush1.msra.mxu0 %v104
    %259 = vmatprep.subr.mxu0 0.0
    %260 = vmatpush1.msra.mxu0 %v105
    %261 = vmatprep.subr.mxu0 0.0
    %262 = vmatpush1.msra.mxu0 %v106
    %263 = vmatprep.subr.mxu0 0.0
    %264 = vmatpush1.msra.mxu0 %v107
    %265 = vmatprep.subr.mxu0 0.0
    %266 = vmatpush1.msra.mxu0 %v108
    %267 = vmatprep.subr.mxu0 0.0
    %268 = vmatpush1.msra.mxu0 %v109
    %269 = vmatprep.subr.mxu0 0.0
    %270 = vmatpush1.msra.mxu0 %v110
    %271 = vmatprep.subr.mxu0 0.0
    %272 = vmatpush1.msra.mxu0 %v111
    %273 = vmatprep.subr.mxu0 0.0
    %274 = vmatpush1.msra.mxu0 %v112
    %275 = vmatprep.subr.mxu0 0.0
    %276 = vmatpush1.msra.mxu0 %v113
    %277 = vmatprep.subr.mxu0 0.0
    %278 = vmatpush1.msra.mxu0 %v114
    %279 = vmatprep.mubr.f32.mxu0 %v56
    %280 = vmatmul.mubr.f32.gmra.mrb[0].mxu0 %v55
    %v281 = vpop.f32.mrb[0].mxu0
    %v282 = vadd.f32 %v214, %v281
    %v283 = vpop.f32.mrb[0].mxu0
    %284 = vmatprep.mubr.f32.mxu0 %v64
    %285 = vmatmul.mubr.f32.gmra.mrb[0].mxu0 %v63
    %v286 = vpop.f32.mrb[0].mxu0
    %v287 = vadd.f32 %v214, %v286
    %v288 = vpop.f32.mrb[0].mxu0
    %289 = vdwg.mxu0
    %290 = vmatprep.subr.mxu0 0.0
    %291 = vmatpush1.msra.mxu0 %v115
    %292 = vmatprep.subr.mxu0 0.0
    %293 = vmatpush1.msra.mxu0 %v116
    %294 = vmatprep.subr.mxu0 0.0
    %295 = vmatpush1.msra.mxu0 %v117
    %296 = vmatprep.subr.mxu0 0.0
    %297 = vmatpush1.msra.mxu0 %v118
    %298 = vmatprep.subr.mxu0 0.0
    %299 = vmatpush1.msra.mxu0 %v119
    %300 = vmatprep.subr.mxu0 0.0
    %301 = vmatpush1.msra.mxu0 %v120
    %302 = vmatprep.subr.mxu0 0.0
    %303 = vmatpush1.msra.mxu0 %v121
    %304 = vmatprep.subr.mxu0 0.0
    %305 = vmatpush1.msra.mxu0 %v122
    %306 = vmatprep.subr.mxu0 0.0
    %307 = vmatpush1.msra.mxu0 %v123
    %308 = vmatprep.subr.mxu0 0.0
    %309 = vmatpush1.msra.mxu0 %v124
    %310 = vmatprep.subr.mxu0 0.0
    %311 = vmatpush1.msra.mxu0 %v125
    %312 = vmatprep.subr.mxu0 0.0
    %313 = vmatpush1.msra.mxu0 %v126
    %314 = vmatprep.subr.mxu0 0.0
    %315 = vmatpush1.msra.mxu0 %v127
    %316 = vmatprep.subr.mxu0 0.0
    %317 = vmatpush1.msra.mxu0 %v128
    %318 = vmatprep.subr.mxu0 0.0
    %319 = vmatpush1.msra.mxu0 %v129
    %320 = vmatprep.subr.mxu0 0.0
    %321 = vmatpush1.msra.mxu0 %v130
    %322 = vmatprep.subr.mxu0 0.0
    %323 = vmatpush1.msra.mxu0 %v131
    %324 = vmatprep.subr.mxu0 0.0
    %325 = vmatpush1.msra.mxu0 %v132
    %326 = vmatprep.subr.mxu0 0.0
    %327 = vmatpush1.msra.mxu0 %v133
    %328 = vmatprep.subr.mxu0 0.0
    %329 = vmatpush1.msra.mxu0 %v134
    %330 = vmatprep.subr.mxu0 0.0
    %331 = vmatpush1.msra.mxu0 %v135
    %332 = vmatprep.subr.mxu0 0.0
    %333 = vmatpush1.msra.mxu0 %v136
    %334 = vmatprep.subr.mxu0 0.0
    %335 = vmatpush1.msra.mxu0 %v137
    %336 = vmatprep.subr.mxu0 0.0
    %337 = vmatpush1.msra.mxu0 %v138
    %338 = vmatprep.subr.mxu0 0.0
    %339 = vmatpush1.msra.mxu0 %v139
    %340 = vmatprep.subr.mxu0 0.0
    %341 = vmatpush1.msra.mxu0 %v140
    %342 = vmatprep.subr.mxu0 0.0
    %343 = vmatpush1.msra.mxu0 %v141
    %344 = vmatprep.subr.mxu0 0.0
    %345 = vmatpush1.msra.mxu0 %v142
    %346 = vmatprep.subr.mxu0 0.0
    %347 = vmatpush1.msra.mxu0 %v143
    %348 = vmatprep.subr.mxu0 0.0
    %349 = vmatpush1.msra.mxu0 %v144
    %350 = vmatprep.subr.mxu0 0.0
    %351 = vmatpush1.msra.mxu0 %v145
    %352 = vmatprep.subr.mxu0 0.0
    %353 = vmatpush1.msra.mxu0 %v146
    %354 = vmatprep.mubr.f32.mxu0 %v58
    %355 = vmatmul.mubr.f32.gmra.mrb[0].mxu0 %v57
    %v356 = vpop.f32.mrb[0].mxu0
    %v357 = vadd.f32 %v282, %v356
    %v358 = vpop.f32.mrb[0].mxu0
    %359 = vmatprep.mubr.f32.mxu0 %v66
    %360 = vmatmul.mubr.f32.gmra.mrb[0].mxu0 %v65
    %v361 = vpop.f32.mrb[0].mxu0
    %v362 = vadd.f32 %v287, %v361
    %v363 = vpop.f32.mrb[0].mxu0
    %364 = vdwg.mxu0
    %365 = vmatprep.subr.mxu0 0.0
    %366 = vmatpush1.msra.mxu0 %v147
    %367 = vmatprep.subr.mxu0 0.0
    %368 = vmatpush1.msra.mxu0 %v148
    %369 = vmatprep.subr.mxu0 0.0
    %370 = vmatpush1.msra.mxu0 %v149
    %371 = vmatprep.subr.mxu0 0.0
    %372 = vmatpush1.msra.mxu0 %v150
    %373 = vmatprep.subr.mxu0 0.0
    %374 = vmatpush1.msra.mxu0 %v151
    %375 = vmatprep.subr.mxu0 0.0
    %376 = vmatpush1.msra.mxu0 %v152
    %377 = vmatprep.subr.mxu0 0.0
    %378 = vmatpush1.msra.mxu0 %v153
    %379 = vmatprep.subr.mxu0 0.0
    %380 = vmatpush1.msra.mxu0 %v154
    %381 = vmatprep.subr.mxu0 0.0
    %382 = vmatpush1.msra.mxu0 %v155
    %383 = vmatprep.subr.mxu0 0.0
    %384 = vmatpush1.msra.mxu0 %v156
    %385 = vmatprep.subr.mxu0 0.0
    %386 = vmatpush1.msra.mxu0 %v157
    %387 = vmatprep.subr.mxu0 0.0
    %388 = vmatpush1.msra.mxu0 %v158
    %389 = vmatprep.subr.mxu0 0.0
    %390 = vmatpush1.msra.mxu0 %v159
    %391 = vmatprep.subr.mxu0 0.0
    %392 = vmatpush1.msra.mxu0 %v160
    %393 = vmatprep.subr.mxu0 0.0
    %394 = vmatpush1.msra.mxu0 %v161
    %395 = vmatprep.subr.mxu0 0.0
    %396 = vmatpush1.msra.mxu0 %v162
    %397 = vmatprep.subr.mxu0 0.0
    %398 = vmatpush1.msra.mxu0 %v163
    %399 = vmatprep.subr.mxu0 0.0
    %400 = vmatpush1.msra.mxu0 %v164
    %401 = vmatprep.subr.mxu0 0.0
    %402 = vmatpush1.msra.mxu0 %v165
    %403 = vmatprep.subr.mxu0 0.0
    %404 = vmatpush1.msra.mxu0 %v166
    %405 = vmatprep.subr.mxu0 0.0
    %406 = vmatpush1.msra.mxu0 %v167
    %407 = vmatprep.subr.mxu0 0.0
    %408 = vmatpush1.msra.mxu0 %v168
    %409 = vmatprep.subr.mxu0 0.0
    %410 = vmatpush1.msra.mxu0 %v169
    %411 = vmatprep.subr.mxu0 0.0
    %412 = vmatpush1.msra.mxu0 %v170
    %413 = vmatprep.subr.mxu0 0.0
    %414 = vmatpush1.msra.mxu0 %v171
    %415 = vmatprep.subr.mxu0 0.0
    %416 = vmatpush1.msra.mxu0 %v172
    %417 = vmatprep.subr.mxu0 0.0
    %418 = vmatpush1.msra.mxu0 %v173
    %419 = vmatprep.subr.mxu0 0.0
    %420 = vmatpush1.msra.mxu0 %v174
    %421 = vmatprep.subr.mxu0 0.0
    %422 = vmatpush1.msra.mxu0 %v175
    %423 = vmatprep.subr.mxu0 0.0
    %424 = vmatpush1.msra.mxu0 %v176
    %425 = vmatprep.subr.mxu0 0.0
    %426 = vmatpush1.msra.mxu0 %v177
    %427 = vmatprep.subr.mxu0 0.0
    %428 = vmatpush1.msra.mxu0 %v178
    %429 = vmatprep.mubr.f32.mxu0 %v60
    %430 = vmatmul.mubr.f32.gmra.mrb[0].mxu0 %v59
    %v431 = vpop.f32.mrb[0].mxu0
    %v432 = vadd.f32 %v357, %v431
    %v433 = vpop.f32.mrb[0].mxu0
    %434 = vmatprep.mubr.f32.mxu0 %v68
    %435 = vmatmul.mubr.f32.gmra.mrb[0].mxu0 %v67
    %v436 = vpop.f32.mrb[0].mxu0
    %v437 = vadd.f32 %v362, %v436
    %v438 = vpop.f32.mrb[0].mxu0
    %439 = vdwg.mxu0
    %440 = vmatprep.subr.mxu0 0.0
    %441 = vmatpush1.msra.mxu0 %v179
    %442 = vmatprep.subr.mxu0 0.0
    %443 = vmatpush1.msra.mxu0 %v180
    %444 = vmatprep.subr.mxu0 0.0
    %445 = vmatpush1.msra.mxu0 %v181
    %446 = vmatprep.subr.mxu0 0.0
    %447 = vmatpush1.msra.mxu0 %v182
    %448 = vmatprep.subr.mxu0 0.0
    %449 = vmatpush1.msra.mxu0 %v183
    %450 = vmatprep.subr.mxu0 0.0
    %451 = vmatpush1.msra.mxu0 %v184
    %452 = vmatprep.subr.mxu0 0.0
    %453 = vmatpush1.msra.mxu0 %v185
    %454 = vmatprep.subr.mxu0 0.0
    %455 = vmatpush1.msra.mxu0 %v186
    %456 = vmatprep.subr.mxu0 0.0
    %457 = vmatpush1.msra.mxu0 %v187
    %458 = vmatprep.subr.mxu0 0.0
    %459 = vmatpush1.msra.mxu0 %v188
    %460 = vmatprep.subr.mxu0 0.0
    %461 = vmatpush1.msra.mxu0 %v189
    %462 = vmatprep.subr.mxu0 0.0
    %463 = vmatpush1.msra.mxu0 %v190
    %464 = vmatprep.subr.mxu0 0.0
    %465 = vmatpush1.msra.mxu0 %v191
    %466 = vmatprep.subr.mxu0 0.0
    %467 = vmatpush1.msra.mxu0 %v192
    %468 = vmatprep.subr.mxu0 0.0
    %469 = vmatpush1.msra.mxu0 %v193
    %470 = vmatprep.subr.mxu0 0.0
    %471 = vmatpush1.msra.mxu0 %v194
    %472 = vmatprep.subr.mxu0 0.0
    %473 = vmatpush1.msra.mxu0 %v195
    %474 = vmatprep.subr.mxu0 0.0
    %475 = vmatpush1.msra.mxu0 %v196
    %476 = vmatprep.subr.mxu0 0.0
    %477 = vmatpush1.msra.mxu0 %v197
    %478 = vmatprep.subr.mxu0 0.0
    %479 = vmatpush1.msra.mxu0 %v198
    %480 = vmatprep.subr.mxu0 0.0
    %481 = vmatpush1.msra.mxu0 %v199
    %482 = vmatprep.subr.mxu0 0.0
    %483 = vmatpush1.msra.mxu0 %v200
    %484 = vmatprep.subr.mxu0 0.0
    %485 = vmatpush1.msra.mxu0 %v201
    %486 = vmatprep.subr.mxu0 0.0
    %487 = vmatpush1.msra.mxu0 %v202
    %488 = vmatprep.subr.mxu0 0.0
    %489 = vmatpush1.msra.mxu0 %v203
    %490 = vmatprep.subr.mxu0 0.0
    %491 = vmatpush1.msra.mxu0 %v204
    %492 = vmatprep.subr.mxu0 0.0
    %493 = vmatpush1.msra.mxu0 %v205
    %494 = vmatprep.subr.mxu0 0.0
    %495 = vmatpush1.msra.mxu0 %v206
    %496 = vmatprep.subr.mxu0 0.0
    %497 = vmatpush1.msra.mxu0 %v207
    %498 = vmatprep.subr.mxu0 0.0
    %499 = vmatpush1.msra.mxu0 %v208
    %500 = vmatprep.subr.mxu0 0.0
    %501 = vmatpush1.msra.mxu0 %v209
    %502 = vmatprep.subr.mxu0 0.0
    %503 = vmatpush1.msra.mxu0 %v210
    %504 = vmatprep.mubr.f32.mxu0 %v62
    %505 = vmatmul.mubr.f32.gmra.mrb[0].mxu0 %v61
    %v506 = vpop.f32.mrb[0].mxu0
    %v507 = vadd.f32 %v432, %v506
    %v508 = vpop.f32.mrb[0].mxu0
    %509 = vmatprep.mubr.f32.mxu0 %v70
    %510 = vmatmul.mubr.f32.gmra.mrb[0].mxu0 %v69
    %v511 = vpop.f32.mrb[0].mxu0
    %v512 = vadd.f32 %v437, %v511
    %v513 = vpop.f32.mrb[0].mxu0
    %514 = vdwg.mxu0
    %v515 = vmax.f32 %v507, 0.0
    %v516 = vmax.f32 %v512, 0.0
    %v517 = vld [vmem:[%s2] sm:$0xff]
    %v518 = vld [vmem:[%s2 + $0x8] sm:$0xff]
    %v519 = vld [vmem:[%s2 + $0x10] sm:$0xff]
    %v520 = vld [vmem:[%s2 + $0x18] sm:$0xff]
    %v521 = vld [vmem:[%s2 + $0x20] sm:$0xff]
    %v522 = vld [vmem:[%s2 + $0x28] sm:$0xff]
    %v523 = vld [vmem:[%s2 + $0x30] sm:$0xff]
    %v524 = vld [vmem:[%s2 + $0x38] sm:$0xff]
    %v525 = vld [vmem:[%s2 + $0x40] sm:$0xff]
    %v526 = vld [vmem:[%s2 + $0x48] sm:$0xff]
    %v527 = vld [vmem:[%s2 + $0x50] sm:$0xff]
    %v528 = vld [vmem:[%s2 + $0x58] sm:$0xff]
    %v529 = vld [vmem:[%s2 + $0x60] sm:$0xff]
    %v530 = vld [vmem:[%s2 + $0x68] sm:$0xff]
    %v531 = vld [vmem:[%s2 + $0x70] sm:$0xff]
    %v532 = vld [vmem:[%s2 + $0x78] sm:$0xff]
    %v533 = vlaneseq
    %v534 = vshrl.u32 %v533, 7
    %v535 = vsub.s32 0, %v534
    %v536 = vrot.slane %v72, %v535
    %537 = vmatprep.subr.mxu0 0.0
    %538 = vmatpush1.msra.mxu0 %v517
    %539 = vmatprep.subr.mxu0 0.0
    %540 = vmatpush1.msra.mxu0 %v518
    %541 = vmatprep.subr.mxu0 0.0
    %542 = vmatpush1.msra.mxu0 %v519
    %543 = vmatprep.subr.mxu0 0.0
    %544 = vmatpush1.msra.mxu0 %v520
    %545 = vmatprep.subr.mxu0 0.0
    %546 = vmatpush1.msra.mxu0 %v521
    %547 = vmatprep.subr.mxu0 0.0
    %548 = vmatpush1.msra.mxu0 %v522
    %549 = vmatprep.subr.mxu0 0.0
    %550 = vmatpush1.msra.mxu0 %v523
    %551 = vmatprep.subr.mxu0 0.0
    %552 = vmatpush1.msra.mxu0 %v524
    %553 = vmatprep.subr.mxu0 0.0
    %554 = vmatpush1.msra.mxu0 %v525
    %555 = vmatprep.subr.mxu0 0.0
    %556 = vmatpush1.msra.mxu0 %v526
    %557 = vmatprep.subr.mxu0 0.0
    %558 = vmatpush1.msra.mxu0 %v527
    %559 = vmatprep.subr.mxu0 0.0
    %560 = vmatpush1.msra.mxu0 %v528
    %561 = vmatprep.subr.mxu0 0.0
    %562 = vmatpush1.msra.mxu0 %v529
    %563 = vmatprep.subr.mxu0 0.0
    %564 = vmatpush1.msra.mxu0 %v530
    %565 = vmatprep.subr.mxu0 0.0
    %566 = vmatpush1.msra.mxu0 %v531
    %567 = vmatprep.subr.mxu0 0.0
    %568 = vmatpush1.msra.mxu0 %v532
    %569 = vmatprep.subr.mxu0 0.0
    %570 = vmatpush1.msra.mxu0 0.0
    %571 = vmatprep.subr.mxu0 0.0
    %572 = vmatpush1.msra.mxu0 0.0
    %573 = vmatprep.subr.mxu0 0.0
    %574 = vmatpush1.msra.mxu0 0.0
    %575 = vmatprep.subr.mxu0 0.0
    %576 = vmatpush1.msra.mxu0 0.0
    %577 = vmatprep.subr.mxu0 0.0
    %578 = vmatpush1.msra.mxu0 0.0
    %579 = vmatprep.subr.mxu0 0.0
    %580 = vmatpush1.msra.mxu0 0.0
    %581 = vmatprep.subr.mxu0 0.0
    %582 = vmatpush1.msra.mxu0 0.0
    %583 = vmatprep.subr.mxu0 0.0
    %584 = vmatpush1.msra.mxu0 0.0
    %585 = vmatprep.subr.mxu0 0.0
    %586 = vmatpush1.msra.mxu0 0.0
    %587 = vmatprep.subr.mxu0 0.0
    %588 = vmatpush1.msra.mxu0 0.0
    %589 = vmatprep.subr.mxu0 0.0
    %590 = vmatpush1.msra.mxu0 0.0
    %591 = vmatprep.subr.mxu0 0.0
    %592 = vmatpush1.msra.mxu0 0.0
    %593 = vmatprep.subr.mxu0 0.0
    %594 = vmatpush1.msra.mxu0 0.0
    %595 = vmatprep.subr.mxu0 0.0
    %596 = vmatpush1.msra.mxu0 0.0
    %597 = vmatprep.subr.mxu0 0.0
    %598 = vmatpush1.msra.mxu0 0.0
    %599 = vmatprep.subr.mxu0 0.0
    %600 = vmatpush1.msra.mxu0 0.0
    %601 = vmatprep.mubr.f32.mxu0 0.0
    %602 = vmatmul.mubr.f32.gmra.mrb[0].mxu0 %v515
    %v603 = vpop.f32.mrb[0].mxu0
    %v604 = vadd.f32 %v536, %v603
    %v605 = vpop.f32.mrb[0].mxu0
    %606 = vmatprep.mubr.f32.mxu0 0.0
    %607 = vmatmul.mubr.f32.gmra.mrb[0].mxu0 %v516
    %v608 = vpop.f32.mrb[0].mxu0
    %v609 = vadd.f32 %v536, %v608
    %v610 = vpop.f32.mrb[0].mxu0
    %611 = vdwg.mxu0
    %v612 = vld [vmem:[%s3] sm:$0xff]
    %v613 = vld [vmem:[%s3 + $0x8] sm:$0xff]
    %v614 = vld [vmem:[%s3 + $0x10] sm:$0xff]
    %v615 = vld [vmem:[%s3 + $0x18] sm:$0xff]
    %v616 = vld [vmem:[%s3 + $0x20] sm:$0xff]
    %v617 = vld [vmem:[%s3 + $0x28] sm:$0xff]
    %v618 = vld [vmem:[%s3 + $0x30] sm:$0xff]
    %v619 = vld [vmem:[%s3 + $0x38] sm:$0xff]
    %v620 = vld [vmem:[%s3 + $0x40] sm:$0xff]
    %v621 = vld [vmem:[%s3 + $0x48] sm:$0xff]
    %v622 = vld [vmem:[%s3 + $0x50] sm:$0xff]
    %v623 = vld [vmem:[%s3 + $0x58] sm:$0xff]
    %v624 = vld [vmem:[%s3 + $0x60] sm:$0xff]
    %v625 = vld [vmem:[%s3 + $0x68] sm:$0xff]
    %v626 = vld [vmem:[%s3 + $0x70] sm:$0xff]
    %v627 = vld [vmem:[%s3 + $0x78] sm:$0xff]
    %v628 = vld [vmem:[%s4] sm:$0xff]
    %v629 = vld [vmem:[%s4 + $0x8] sm:$0xff]
    %v630 = vld [vmem:[%s4 + $0x10] sm:$0xff]
    %v631 = vld [vmem:[%s4 + $0x18] sm:$0xff]
    %v632 = vld [vmem:[%s4 + $0x20] sm:$0xff]
    %v633 = vld [vmem:[%s4 + $0x28] sm:$0xff]
    %v634 = vld [vmem:[%s4 + $0x30] sm:$0xff]
    %v635 = vld [vmem:[%s4 + $0x38] sm:$0xff]
    %v636 = vld [vmem:[%s4 + $0x40] sm:$0xff]
    %v637 = vld [vmem:[%s4 + $0x48] sm:$0xff]
    %v638 = vld [vmem:[%s4 + $0x50] sm:$0xff]
    %v639 = vld [vmem:[%s4 + $0x58] sm:$0xff]
    %v640 = vld [vmem:[%s4 + $0x60] sm:$0xff]
    %v641 = vld [vmem:[%s4 + $0x68] sm:$0xff]
    %v642 = vld [vmem:[%s4 + $0x70] sm:$0xff]
    %v643 = vld [vmem:[%s4 + $0x78] sm:$0xff]
    %v644 = vld [vmem:[#allocation5] sm:$0xff]
    %v645 = vld [vmem:[#allocation5 + $0x8] sm:$0xff]
    %v646 = vld [vmem:[#allocation5 + $0x10] sm:$0xff]
    %v647 = vld [vmem:[#allocation5 + $0x18] sm:$0xff]
    %v648 = vld [vmem:[#allocation5 + $0x20] sm:$0xff]
    %v649 = vld [vmem:[#allocation5 + $0x28] sm:$0xff]
    %v650 = vld [vmem:[#allocation5 + $0x30] sm:$0xff]
    %v651 = vld [vmem:[#allocation5 + $0x38] sm:$0xff]
    %v652 = vld [vmem:[#allocation5 + $0x40] sm:$0xff]
    %v653 = vld [vmem:[#allocation5 + $0x48] sm:$0xff]
    %v654 = vld [vmem:[#allocation5 + $0x50] sm:$0xff]
    %v655 = vld [vmem:[#allocation5 + $0x58] sm:$0xff]
    %v656 = vld [vmem:[#allocation5 + $0x60] sm:$0xff]
    %v657 = vld [vmem:[#allocation5 + $0x68] sm:$0xff]
    %v658 = vld [vmem:[#allocation5 + $0x70] sm:$0xff]
    %v659 = vld [vmem:[#allocation5 + $0x78] sm:$0xff]
    %v660 = vmax.f32 %v604, 0.0
    %v661 = vmax.f32 %v609, 0.0
    %662 = vmatprep.subr.mxu0 0.0
    %663 = vmatpush1.msra.mxu0 %v628
    %664 = vmatprep.subr.mxu0 0.0
    %665 = vmatpush1.msra.mxu0 %v629
    %666 = vmatprep.subr.mxu0 0.0
    %667 = vmatpush1.msra.mxu0 %v630
    %668 = vmatprep.subr.mxu0 0.0
    %669 = vmatpush1.msra.mxu0 %v631
    %670 = vmatprep.subr.mxu0 0.0
    %671 = vmatpush1.msra.mxu0 %v632
    %672 = vmatprep.subr.mxu0 0.0
    %673 = vmatpush1.msra.mxu0 %v633
    %674 = vmatprep.subr.mxu0 0.0
    %675 = vmatpush1.msra.mxu0 %v634
    %676 = vmatprep.subr.mxu0 0.0
    %677 = vmatpush1.msra.mxu0 %v635
    %678 = vmatprep.subr.mxu0 0.0
    %679 = vmatpush1.msra.mxu0 %v636
    %680 = vmatprep.subr.mxu0 0.0
    %681 = vmatpush1.msra.mxu0 %v637
    %682 = vmatprep.subr.mxu0 0.0
    %683 = vmatpush1.msra.mxu0 %v638
    %684 = vmatprep.subr.mxu0 0.0
    %685 = vmatpush1.msra.mxu0 %v639
    %686 = vmatprep.subr.mxu0 0.0
    %687 = vmatpush1.msra.mxu0 %v640
    %688 = vmatprep.subr.mxu0 0.0
    %689 = vmatpush1.msra.mxu0 %v641
    %690 = vmatprep.subr.mxu0 0.0
    %691 = vmatpush1.msra.mxu0 %v642
    %692 = vmatprep.subr.mxu0 0.0
    %693 = vmatpush1.msra.mxu0 %v643
    %694 = vmatprep.subr.mxu0 0.0
    %695 = vmatpush1.msra.mxu0 0.0
    %696 = vmatprep.subr.mxu0 0.0
    %697 = vmatpush1.msra.mxu0 0.0
    %698 = vmatprep.subr.mxu0 0.0
    %699 = vmatpush1.msra.mxu0 0.0
    %700 = vmatprep.subr.mxu0 0.0
    %701 = vmatpush1.msra.mxu0 0.0
    %702 = vmatprep.subr.mxu0 0.0
    %703 = vmatpush1.msra.mxu0 0.0
    %704 = vmatprep.subr.mxu0 0.0
    %705 = vmatpush1.msra.mxu0 0.0
    %706 = vmatprep.subr.mxu0 0.0
    %707 = vmatpush1.msra.mxu0 0.0
    %708 = vmatprep.subr.mxu0 0.0
    %709 = vmatpush1.msra.mxu0 0.0
    %710 = vmatprep.subr.mxu0 0.0
    %711 = vmatpush1.msra.mxu0 0.0
    %712 = vmatprep.subr.mxu0 0.0
    %713 = vmatpush1.msra.mxu0 0.0
    %714 = vmatprep.subr.mxu0 0.0
    %715 = vmatpush1.msra.mxu0 0.0
    %716 = vmatprep.subr.mxu0 0.0
    %717 = vmatpush1.msra.mxu0 0.0
    %718 = vmatprep.subr.mxu0 0.0
    %719 = vmatpush1.msra.mxu0 0.0
    %720 = vmatprep.subr.mxu0 0.0
    %721 = vmatpush1.msra.mxu0 0.0
    %722 = vmatprep.subr.mxu0 0.0
    %723 = vmatpush1.msra.mxu0 0.0
    %724 = vmatprep.subr.mxu0 0.0
    %725 = vmatpush1.msra.mxu0 0.0
    %726 = vmatprep.mubr.f32.mxu0 0.0
    %727 = vmatmul.mubr.f32.gmra.mrb[0].mxu0 %v660
    %v728 = vpop.f32.mrb[0].mxu0
    %v729 = vadd.f32 %v77, %v728
    %v730 = vpop.f32.mrb[0].mxu0
    %731 = vmatprep.mubr.f32.mxu0 0.0
    %732 = vmatmul.mubr.f32.gmra.mrb[0].mxu0 %v661
    %v733 = vpop.f32.mrb[0].mxu0
    %v734 = vadd.f32 %v77, %v733
    %v735 = vpop.f32.mrb[0].mxu0
    %736 = vdwg.mxu0
    %v737 = vmax.f32 %v729, 0.0
    %v738 = vmax.f32 %v734, 0.0
    %739 = vmatprep.subr.mxu0 0.0
    %740 = vmatpush1.msra.mxu0 %v644
    %741 = vmatprep.subr.mxu0 0.0
    %742 = vmatpush1.msra.mxu0 %v645
    %743 = vmatprep.subr.mxu0 0.0
    %744 = vmatpush1.msra.mxu0 %v646
    %745 = vmatprep.subr.mxu0 0.0
    %746 = vmatpush1.msra.mxu0 %v647
    %747 = vmatprep.subr.mxu0 0.0
    %748 = vmatpush1.msra.mxu0 %v648
    %749 = vmatprep.subr.mxu0 0.0
    %750 = vmatpush1.msra.mxu0 %v649
    %751 = vmatprep.subr.mxu0 0.0
    %752 = vmatpush1.msra.mxu0 %v650
    %753 = vmatprep.subr.mxu0 0.0
    %754 = vmatpush1.msra.mxu0 %v651
    %755 = vmatprep.subr.mxu0 0.0
    %756 = vmatpush1.msra.mxu0 %v652
    %757 = vmatprep.subr.mxu0 0.0
    %758 = vmatpush1.msra.mxu0 %v653
    %759 = vmatprep.subr.mxu0 0.0
    %760 = vmatpush1.msra.mxu0 %v654
    %761 = vmatprep.subr.mxu0 0.0
    %762 = vmatpush1.msra.mxu0 %v655
    %763 = vmatprep.subr.mxu0 0.0
    %764 = vmatpush1.msra.mxu0 %v656
    %765 = vmatprep.subr.mxu0 0.0
    %766 = vmatpush1.msra.mxu0 %v657
    %767 = vmatprep.subr.mxu0 0.0
    %768 = vmatpush1.msra.mxu0 %v658
    %769 = vmatprep.subr.mxu0 0.0
    %770 = vmatpush1.msra.mxu0 %v659
    %771 = vmatprep.subr.mxu0 0.0
    %772 = vmatpush1.msra.mxu0 0.0
    %773 = vmatprep.subr.mxu0 0.0
    %774 = vmatpush1.msra.mxu0 0.0
    %775 = vmatprep.subr.mxu0 0.0
    %776 = vmatpush1.msra.mxu0 0.0
    %777 = vmatprep.subr.mxu0 0.0
    %778 = vmatpush1.msra.mxu0 0.0
    %779 = vmatprep.subr.mxu0 0.0
    %780 = vmatpush1.msra.mxu0 0.0
    %781 = vmatprep.subr.mxu0 0.0
    %782 = vmatpush1.msra.mxu0 0.0
    %783 = vmatprep.subr.mxu0 0.0
    %784 = vmatpush1.msra.mxu0 0.0
    %785 = vmatprep.subr.mxu0 0.0
    %786 = vmatpush1.msra.mxu0 0.0
    %787 = vmatprep.subr.mxu0 0.0
    %788 = vmatpush1.msra.mxu0 0.0
    %789 = vmatprep.subr.mxu0 0.0
    %790 = vmatpush1.msra.mxu0 0.0
    %791 = vmatprep.subr.mxu0 0.0
    %792 = vmatpush1.msra.mxu0 0.0
    %793 = vmatprep.subr.mxu0 0.0
    %794 = vmatpush1.msra.mxu0 0.0
    %795 = vmatprep.subr.mxu0 0.0
    %796 = vmatpush1.msra.mxu0 0.0
    %797 = vmatprep.subr.mxu0 0.0
    %798 = vmatpush1.msra.mxu0 0.0
    %799 = vmatprep.subr.mxu0 0.0
    %800 = vmatpush1.msra.mxu0 0.0
    %801 = vmatprep.subr.mxu0 0.0
    %802 = vmatpush1.msra.mxu0 0.0
    %803 = vmatprep.mubr.f32.mxu0 0.0
    %804 = vmatmul.mubr.f32.gmra.mrb[0].mxu0 %v737
    %v805 = vpop.f32.mrb[0].mxu0
    %v806 = vadd.f32 %v82, %v805
    %v807 = vpop.f32.mrb[0].mxu0
    %808 = vmatprep.mubr.f32.mxu0 0.0
    %809 = vmatmul.mubr.f32.gmra.mrb[0].mxu0 %v738
    %v810 = vpop.f32.mrb[0].mxu0
    %v811 = vadd.f32 %v82, %v810
    %v812 = vpop.f32.mrb[0].mxu0
    %813 = vdwg.mxu0
    %v814 = vsub.f32 %v806, %v811
    %v815 = vand.u32 2147483647, %v814
    %v816 = vadd.f32 %v815, 0.0
    %817 = vmatprep.subr.mxu0 0.0
    %818 = vmatpush1.msra.mxu0 %v612
    %819 = vmatprep.subr.mxu0 0.0
    %820 = vmatpush1.msra.mxu0 %v613
    %821 = vmatprep.subr.mxu0 0.0
    %822 = vmatpush1.msra.mxu0 %v614
    %823 = vmatprep.subr.mxu0 0.0
    %824 = vmatpush1.msra.mxu0 %v615
    %825 = vmatprep.subr.mxu0 0.0
    %826 = vmatpush1.msra.mxu0 %v616
    %827 = vmatprep.subr.mxu0 0.0
    %828 = vmatpush1.msra.mxu0 %v617
    %829 = vmatprep.subr.mxu0 0.0
    %830 = vmatpush1.msra.mxu0 %v618
    %831 = vmatprep.subr.mxu0 0.0
    %832 = vmatpush1.msra.mxu0 %v619
    %833 = vmatprep.subr.mxu0 0.0
    %834 = vmatpush1.msra.mxu0 %v620
    %835 = vmatprep.subr.mxu0 0.0
    %836 = vmatpush1.msra.mxu0 %v621
    %837 = vmatprep.subr.mxu0 0.0
    %838 = vmatpush1.msra.mxu0 %v622
    %839 = vmatprep.subr.mxu0 0.0
    %840 = vmatpush1.msra.mxu0 %v623
    %841 = vmatprep.subr.mxu0 0.0
    %842 = vmatpush1.msra.mxu0 %v624
    %843 = vmatprep.subr.mxu0 0.0
    %844 = vmatpush1.msra.mxu0 %v625
    %845 = vmatprep.subr.mxu0 0.0
    %846 = vmatpush1.msra.mxu0 %v626
    %847 = vmatprep.subr.mxu0 0.0
    %848 = vmatpush1.msra.mxu0 %v627
    %849 = vmatprep.subr.mxu0 0.0
    %850 = vmatpush1.msra.mxu0 0.0
    %851 = vmatprep.subr.mxu0 0.0
    %852 = vmatpush1.msra.mxu0 0.0
    %853 = vmatprep.subr.mxu0 0.0
    %854 = vmatpush1.msra.mxu0 0.0
    %855 = vmatprep.subr.mxu0 0.0
    %856 = vmatpush1.msra.mxu0 0.0
    %857 = vmatprep.subr.mxu0 0.0
    %858 = vmatpush1.msra.mxu0 0.0
    %859 = vmatprep.subr.mxu0 0.0
    %860 = vmatpush1.msra.mxu0 0.0
    %861 = vmatprep.subr.mxu0 0.0
    %862 = vmatpush1.msra.mxu0 0.0
    %863 = vmatprep.subr.mxu0 0.0
    %864 = vmatpush1.msra.mxu0 0.0
    %865 = vmatprep.subr.mxu0 0.0
    %866 = vmatpush1.msra.mxu0 0.0
    %867 = vmatprep.subr.mxu0 0.0
    %868 = vmatpush1.msra.mxu0 0.0
    %869 = vmatprep.subr.mxu0 0.0
    %870 = vmatpush1.msra.mxu0 0.0
    %871 = vmatprep.subr.mxu0 0.0
    %872 = vmatpush1.msra.mxu0 0.0
    %873 = vmatprep.subr.mxu0 0.0
    %874 = vmatpush1.msra.mxu0 0.0
    %875 = vmatprep.subr.mxu0 0.0
    %876 = vmatpush1.msra.mxu0 0.0
    %877 = vmatprep.subr.mxu0 0.0
    %878 = vmatpush1.msra.mxu0 0.0
    %879 = vmatprep.subr.mxu0 0.0
    %880 = vmatpush1.msra.mxu0 0.0
    %881 = vmatprep.mubr.f32.mxu0 0.0
    %882 = vmatmul.mubr.f32.gmra.mrb[0].mxu0 %v806
    %v883 = vpop.f32.mrb[0].mxu0
    %v884 = vadd.f32 0.0, %v883
    %v885 = vpop.f32.mrb[0].mxu0
    %886 = vmatprep.mubr.f32.mxu0 0.0
    %887 = vmatmul.mubr.f32.gmra.mrb[0].mxu0 %v811
    %v888 = vpop.f32.mrb[0].mxu0
    %v889 = vadd.f32 0.0, %v888
    %v890 = vpop.f32.mrb[0].mxu0
    %891 = vdwg.mxu0
    %v892 = vadd.f32 %v604, %v884
    %v893 = vadd.f32 %v609, %v889
    %v894 = vmax.f32 %v892, 0.0
    %v895 = vmax.f32 %v893, 0.0
    %896 = vmatprep.subr.mxu0 0.0
    %897 = vmatpush1.msra.mxu0 %v628
    %898 = vmatprep.subr.mxu0 0.0
    %899 = vmatpush1.msra.mxu0 %v629
    %900 = vmatprep.subr.mxu0 0.0
    %901 = vmatpush1.msra.mxu0 %v630
    %902 = vmatprep.subr.mxu0 0.0
    %903 = vmatpush1.msra.mxu0 %v631
    %904 = vmatprep.subr.mxu0 0.0
    %905 = vmatpush1.msra.mxu0 %v632
    %906 = vmatprep.subr.mxu0 0.0
    %907 = vmatpush1.msra.mxu0 %v633
    %908 = vmatprep.subr.mxu0 0.0
    %909 = vmatpush1.msra.mxu0 %v634
    %910 = vmatprep.subr.mxu0 0.0
    %911 = vmatpush1.msra.mxu0 %v635
    %912 = vmatprep.subr.mxu0 0.0
    %913 = vmatpush1.msra.mxu0 %v636
    %914 = vmatprep.subr.mxu0 0.0
    %915 = vmatpush1.msra.mxu0 %v637
    %916 = vmatprep.subr.mxu0 0.0
    %917 = vmatpush1.msra.mxu0 %v638
    %918 = vmatprep.subr.mxu0 0.0
    %919 = vmatpush1.msra.mxu0 %v639
    %920 = vmatprep.subr.mxu0 0.0
    %921 = vmatpush1.msra.mxu0 %v640
    %922 = vmatprep.subr.mxu0 0.0
    %923 = vmatpush1.msra.mxu0 %v641
    %924 = vmatprep.subr.mxu0 0.0
    %925 = vmatpush1.msra.mxu0 %v642
    %926 = vmatprep.subr.mxu0 0.0
    %927 = vmatpush1.msra.mxu0 %v643
    %928 = vmatprep.subr.mxu0 0.0
    %929 = vmatpush1.msra.mxu0 0.0
    %930 = vmatprep.subr.mxu0 0.0
    %931 = vmatpush1.msra.mxu0 0.0
    %932 = vmatprep.subr.mxu0 0.0
    %933 = vmatpush1.msra.mxu0 0.0
    %934 = vmatprep.subr.mxu0 0.0
    %935 = vmatpush1.msra.mxu0 0.0
    %936 = vmatprep.subr.mxu0 0.0
    %937 = vmatpush1.msra.mxu0 0.0
    %938 = vmatprep.subr.mxu0 0.0
    %939 = vmatpush1.msra.mxu0 0.0
    %940 = vmatprep.subr.mxu0 0.0
    %941 = vmatpush1.msra.mxu0 0.0
    %942 = vmatprep.subr.mxu0 0.0
    %943 = vmatpush1.msra.mxu0 0.0
    %944 = vmatprep.subr.mxu0 0.0
    %945 = vmatpush1.msra.mxu0 0.0
    %946 = vmatprep.subr.mxu0 0.0
    %947 = vmatpush1.msra.mxu0 0.0
    %948 = vmatprep.subr.mxu0 0.0
    %949 = vmatpush1.msra.mxu0 0.0
    %950 = vmatprep.subr.mxu0 0.0
    %951 = vmatpush1.msra.mxu0 0.0
    %952 = vmatprep.subr.mxu0 0.0
    %953 = vmatpush1.msra.mxu0 0.0
    %954 = vmatprep.subr.mxu0 0.0
    %955 = vmatpush1.msra.mxu0 0.0
    %956 = vmatprep.subr.mxu0 0.0
    %957 = vmatpush1.msra.mxu0 0.0
    %958 = vmatprep.subr.mxu0 0.0
    %959 = vmatpush1.msra.mxu0 0.0
    %960 = vmatprep.mubr.f32.mxu0 0.0
    %961 = vmatmul.mubr.f32.gmra.mrb[0].mxu0 %v894
    %v962 = vpop.f32.mrb[0].mxu0
    %v963 = vadd.f32 %v77, %v962
    %v964 = vpop.f32.mrb[0].mxu0
    %965 = vmatprep.mubr.f32.mxu0 0.0
    %966 = vmatmul.mubr.f32.gmra.mrb[0].mxu0 %v895
    %v967 = vpop.f32.mrb[0].mxu0
    %v968 = vadd.f32 %v77, %v967
    %v969 = vpop.f32.mrb[0].mxu0
    %970 = vdwg.mxu0
    %v971 = vmax.f32 %v963, 0.0
    %v972 = vmax.f32 %v968, 0.0
    %973 = vmatprep.subr.mxu0 0.0
    %974 = vmatpush1.msra.mxu0 %v644
    %975 = vmatprep.subr.mxu0 0.0
    %976 = vmatpush1.msra.mxu0 %v645
    %977 = vmatprep.subr.mxu0 0.0
    %978 = vmatpush1.msra.mxu0 %v646
    %979 = vmatprep.subr.mxu0 0.0
    %980 = vmatpush1.msra.mxu0 %v647
    %981 = vmatprep.subr.mxu0 0.0
    %982 = vmatpush1.msra.mxu0 %v648
    %983 = vmatprep.subr.mxu0 0.0
    %984 = vmatpush1.msra.mxu0 %v649
    %985 = vmatprep.subr.mxu0 0.0
    %986 = vmatpush1.msra.mxu0 %v650
    %987 = vmatprep.subr.mxu0 0.0
    %988 = vmatpush1.msra.mxu0 %v651
    %989 = vmatprep.subr.mxu0 0.0
    %990 = vmatpush1.msra.mxu0 %v652
    %991 = vmatprep.subr.mxu0 0.0
    %992 = vmatpush1.msra.mxu0 %v653
    %993 = vmatprep.subr.mxu0 0.0
    %994 = vmatpush1.msra.mxu0 %v654
    %995 = vmatprep.subr.mxu0 0.0
    %996 = vmatpush1.msra.mxu0 %v655
    %997 = vmatprep.subr.mxu0 0.0
    %998 = vmatpush1.msra.mxu0 %v656
    %999 = vmatprep.subr.mxu0 0.0
    %1000 = vmatpush1.msra.mxu0 %v657
    %1001 = vmatprep.subr.mxu0 0.0
    %1002 = vmatpush1.msra.mxu0 %v658
    %1003 = vmatprep.subr.mxu0 0.0
    %1004 = vmatpush1.msra.mxu0 %v659
    %1005 = vmatprep.subr.mxu0 0.0
    %1006 = vmatpush1.msra.mxu0 0.0
    %1007 = vmatprep.subr.mxu0 0.0
    %1008 = vmatpush1.msra.mxu0 0.0
    %1009 = vmatprep.subr.mxu0 0.0
    %1010 = vmatpush1.msra.mxu0 0.0
    %1011 = vmatprep.subr.mxu0 0.0
    %1012 = vmatpush1.msra.mxu0 0.0
    %1013 = vmatprep.subr.mxu0 0.0
    %1014 = vmatpush1.msra.mxu0 0.0
    %1015 = vmatprep.subr.mxu0 0.0
    %1016 = vmatpush1.msra.mxu0 0.0
    %1017 = vmatprep.subr.mxu0 0.0
    %1018 = vmatpush1.msra.mxu0 0.0
    %1019 = vmatprep.subr.mxu0 0.0
    %1020 = vmatpush1.msra.mxu0 0.0
    %1021 = vmatprep.subr.mxu0 0.0
    %1022 = vmatpush1.msra.mxu0 0.0
    %1023 = vmatprep.subr.mxu0 0.0
    %1024 = vmatpush1.msra.mxu0 0.0
    %1025 = vmatprep.subr.mxu0 0.0
    %1026 = vmatpush1.msra.mxu0 0.0
    %1027 = vmatprep.subr.mxu0 0.0
    %1028 = vmatpush1.msra.mxu0 0.0
    %1029 = vmatprep.subr.mxu0 0.0
    %1030 = vmatpush1.msra.mxu0 0.0
    %1031 = vmatprep.subr.mxu0 0.0
    %1032 = vmatpush1.msra.mxu0 0.0
    %1033 = vmatprep.subr.mxu0 0.0
    %1034 = vmatpush1.msra.mxu0 0.0
    %1035 = vmatprep.subr.mxu0 0.0
    %1036 = vmatpush1.msra.mxu0 0.0
    %1037 = vmatprep.mubr.f32.mxu0 0.0
    %1038 = vmatmul.mubr.f32.gmra.mrb[0].mxu0 %v971
    %v1039 = vpop.f32.mrb[0].mxu0
    %v1040 = vadd.f32 %v82, %v1039
    %v1041 = vpop.f32.mrb[0].mxu0
    %1042 = vmatprep.mubr.f32.mxu0 0.0
    %1043 = vmatmul.mubr.f32.gmra.mrb[0].mxu0 %v972
    %v1044 = vpop.f32.mrb[0].mxu0
    %v1045 = vadd.f32 %v82, %v1044
    %v1046 = vpop.f32.mrb[0].mxu0
    %1047 = vdwg.mxu0
    %v1048 = vadd.f32 %v806, %v1040
    %v1049 = vadd.f32 %v811, %v1045
    %v1050 = vsub.f32 %v1048, %v1049
    %v1051 = vand.u32 2147483647, %v1050
    %v1052 = vadd.f32 %v816, %v1051
    %1053 = vmatprep.subr.mxu0 0.0
    %1054 = vmatpush1.msra.mxu0 %v612
    %1055 = vmatprep.subr.mxu0 0.0
    %1056 = vmatpush1.msra.mxu0 %v613
    %1057 = vmatprep.subr.mxu0 0.0
    %1058 = vmatpush1.msra.mxu0 %v614
    %1059 = vmatprep.subr.mxu0 0.0
    %1060 = vmatpush1.msra.mxu0 %v615
    %1061 = vmatprep.subr.mxu0 0.0
    %1062 = vmatpush1.msra.mxu0 %v616
    %1063 = vmatprep.subr.mxu0 0.0
    %1064 = vmatpush1.msra.mxu0 %v617
    %1065 = vmatprep.subr.mxu0 0.0
    %1066 = vmatpush1.msra.mxu0 %v618
    %1067 = vmatprep.subr.mxu0 0.0
    %1068 = vmatpush1.msra.mxu0 %v619
    %1069 = vmatprep.subr.mxu0 0.0
    %1070 = vmatpush1.msra.mxu0 %v620
    %1071 = vmatprep.subr.mxu0 0.0
    %1072 = vmatpush1.msra.mxu0 %v621
    %1073 = vmatprep.subr.mxu0 0.0
    %1074 = vmatpush1.msra.mxu0 %v622
    %1075 = vmatprep.subr.mxu0 0.0
    %1076 = vmatpush1.msra.mxu0 %v623
    %1077 = vmatprep.subr.mxu0 0.0
    %1078 = vmatpush1.msra.mxu0 %v624
    %1079 = vmatprep.subr.mxu0 0.0
    %1080 = vmatpush1.msra.mxu0 %v625
    %1081 = vmatprep.subr.mxu0 0.0
    %1082 = vmatpush1.msra.mxu0 %v626
    %1083 = vmatprep.subr.mxu0 0.0
    %1084 = vmatpush1.msra.mxu0 %v627
    %1085 = vmatprep.subr.mxu0 0.0
    %1086 = vmatpush1.msra.mxu0 0.0
    %1087 = vmatprep.subr.mxu0 0.0
    %1088 = vmatpush1.msra.mxu0 0.0
    %1089 = vmatprep.subr.mxu0 0.0
    %1090 = vmatpush1.msra.mxu0 0.0
    %1091 = vmatprep.subr.mxu0 0.0
    %1092 = vmatpush1.msra.mxu0 0.0
    %1093 = vmatprep.subr.mxu0 0.0
    %1094 = vmatpush1.msra.mxu0 0.0
    %1095 = vmatprep.subr.mxu0 0.0
    %1096 = vmatpush1.msra.mxu0 0.0
    %1097 = vmatprep.subr.mxu0 0.0
    %1098 = vmatpush1.msra.mxu0 0.0
    %1099 = vmatprep.subr.mxu0 0.0
    %1100 = vmatpush1.msra.mxu0 0.0
    %1101 = vmatprep.subr.mxu0 0.0
    %1102 = vmatpush1.msra.mxu0 0.0
    %1103 = vmatprep.subr.mxu0 0.0
    %1104 = vmatpush1.msra.mxu0 0.0
    %1105 = vmatprep.subr.mxu0 0.0
    %1106 = vmatpush1.msra.mxu0 0.0
    %1107 = vmatprep.subr.mxu0 0.0
    %1108 = vmatpush1.msra.mxu0 0.0
    %1109 = vmatprep.subr.mxu0 0.0
    %1110 = vmatpush1.msra.mxu0 0.0
    %1111 = vmatprep.subr.mxu0 0.0
    %1112 = vmatpush1.msra.mxu0 0.0
    %1113 = vmatprep.subr.mxu0 0.0
    %1114 = vmatpush1.msra.mxu0 0.0
    %1115 = vmatprep.subr.mxu0 0.0
    %1116 = vmatpush1.msra.mxu0 0.0
    %1117 = vmatprep.mubr.f32.mxu0 0.0
    %1118 = vmatmul.mubr.f32.gmra.mrb[0].mxu0 %v1048
    %v1119 = vpop.f32.mrb[0].mxu0
    %v1120 = vadd.f32 0.0, %v1119
    %v1121 = vpop.f32.mrb[0].mxu0
    %1122 = vmatprep.mubr.f32.mxu0 0.0
    %1123 = vmatmul.mubr.f32.gmra.mrb[0].mxu0 %v1049
    %v1124 = vpop.f32.mrb[0].mxu0
    %v1125 = vadd.f32 0.0, %v1124
    %v1126 = vpop.f32.mrb[0].mxu0
    %1127 = vdwg.mxu0
    %v1128 = vadd.f32 %v604, %v1120
    %v1129 = vadd.f32 %v609, %v1125
    %v1130 = vmax.f32 %v1128, 0.0
    %v1131 = vmax.f32 %v1129, 0.0
    %1132 = vmatprep.subr.mxu0 0.0
    %1133 = vmatpush1.msra.mxu0 %v628
    %1134 = vmatprep.subr.mxu0 0.0
    %1135 = vmatpush1.msra.mxu0 %v629
    %1136 = vmatprep.subr.mxu0 0.0
    %1137 = vmatpush1.msra.mxu0 %v630
    %1138 = vmatprep.subr.mxu0 0.0
    %1139 = vmatpush1.msra.mxu0 %v631
    %1140 = vmatprep.subr.mxu0 0.0
    %1141 = vmatpush1.msra.mxu0 %v632
    %1142 = vmatprep.subr.mxu0 0.0
    %1143 = vmatpush1.msra.mxu0 %v633
    %1144 = vmatprep.subr.mxu0 0.0
    %1145 = vmatpush1.msra.mxu0 %v634
    %1146 = vmatprep.subr.mxu0 0.0
    %1147 = vmatpush1.msra.mxu0 %v635
    %1148 = vmatprep.subr.mxu0 0.0
    %1149 = vmatpush1.msra.mxu0 %v636
    %1150 = vmatprep.subr.mxu0 0.0
    %1151 = vmatpush1.msra.mxu0 %v637
    %1152 = vmatprep.subr.mxu0 0.0
    %1153 = vmatpush1.msra.mxu0 %v638
    %1154 = vmatprep.subr.mxu0 0.0
    %1155 = vmatpush1.msra.mxu0 %v639
    %1156 = vmatprep.subr.mxu0 0.0
    %1157 = vmatpush1.msra.mxu0 %v640
    %1158 = vmatprep.subr.mxu0 0.0
    %1159 = vmatpush1.msra.mxu0 %v641
    %1160 = vmatprep.subr.mxu0 0.0
    %1161 = vmatpush1.msra.mxu0 %v642
    %1162 = vmatprep.subr.mxu0 0.0
    %1163 = vmatpush1.msra.mxu0 %v643
    %1164 = vmatprep.subr.mxu0 0.0
    %1165 = vmatpush1.msra.mxu0 0.0
    %1166 = vmatprep.subr.mxu0 0.0
    %1167 = vmatpush1.msra.mxu0 0.0
    %1168 = vmatprep.subr.mxu0 0.0
    %1169 = vmatpush1.msra.mxu0 0.0
    %1170 = vmatprep.subr.mxu0 0.0
    %1171 = vmatpush1.msra.mxu0 0.0
    %1172 = vmatprep.subr.mxu0 0.0
    %1173 = vmatpush1.msra.mxu0 0.0
    %1174 = vmatprep.subr.mxu0 0.0
    %1175 = vmatpush1.msra.mxu0 0.0
    %1176 = vmatprep.subr.mxu0 0.0
    %1177 = vmatpush1.msra.mxu0 0.0
    %1178 = vmatprep.subr.mxu0 0.0
    %1179 = vmatpush1.msra.mxu0 0.0
    %1180 = vmatprep.subr.mxu0 0.0
    %1181 = vmatpush1.msra.mxu0 0.0
    %1182 = vmatprep.subr.mxu0 0.0
    %1183 = vmatpush1.msra.mxu0 0.0
    %1184 = vmatprep.subr.mxu0 0.0
    %1185 = vmatpush1.msra.mxu0 0.0
    %1186 = vmatprep.subr.mxu0 0.0
    %1187 = vmatpush1.msra.mxu0 0.0
    %1188 = vmatprep.subr.mxu0 0.0
    %1189 = vmatpush1.msra.mxu0 0.0
    %1190 = vmatprep.subr.mxu0 0.0
    %1191 = vmatpush1.msra.mxu0 0.0
    %1192 = vmatprep.subr.mxu0 0.0
    %1193 = vmatpush1.msra.mxu0 0.0
    %1194 = vmatprep.subr.mxu0 0.0
    %1195 = vmatpush1.msra.mxu0 0.0
    %1196 = vmatprep.mubr.f32.mxu0 0.0
    %1197 = vmatmul.mubr.f32.gmra.mrb[0].mxu0 %v1130
    %v1198 = vpop.f32.mrb[0].mxu0
    %v1199 = vadd.f32 %v77, %v1198
    %v1200 = vpop.f32.mrb[0].mxu0
    %1201 = vmatprep.mubr.f32.mxu0 0.0
    %1202 = vmatmul.mubr.f32.gmra.mrb[0].mxu0 %v1131
    %v1203 = vpop.f32.mrb[0].mxu0
    %v1204 = vadd.f32 %v77, %v1203
    %v1205 = vpop.f32.mrb[0].mxu0
    %1206 = vdwg.mxu0
    %v1207 = vmax.f32 %v1199, 0.0
    %v1208 = vmax.f32 %v1204, 0.0
    %1209 = vmatprep.subr.mxu0 0.0
    %1210 = vmatpush1.msra.mxu0 %v644
    %1211 = vmatprep.subr.mxu0 0.0
    %1212 = vmatpush1.msra.mxu0 %v645
    %1213 = vmatprep.subr.mxu0 0.0
    %1214 = vmatpush1.msra.mxu0 %v646
    %1215 = vmatprep.subr.mxu0 0.0
    %1216 = vmatpush1.msra.mxu0 %v647
    %1217 = vmatprep.subr.mxu0 0.0
    %1218 = vmatpush1.msra.mxu0 %v648
    %1219 = vmatprep.subr.mxu0 0.0
    %1220 = vmatpush1.msra.mxu0 %v649
    %1221 = vmatprep.subr.mxu0 0.0
    %1222 = vmatpush1.msra.mxu0 %v650
    %1223 = vmatprep.subr.mxu0 0.0
    %1224 = vmatpush1.msra.mxu0 %v651
    %1225 = vmatprep.subr.mxu0 0.0
    %1226 = vmatpush1.msra.mxu0 %v652
    %1227 = vmatprep.subr.mxu0 0.0
    %1228 = vmatpush1.msra.mxu0 %v653
    %1229 = vmatprep.subr.mxu0 0.0
    %1230 = vmatpush1.msra.mxu0 %v654
    %1231 = vmatprep.subr.mxu0 0.0
    %1232 = vmatpush1.msra.mxu0 %v655
    %1233 = vmatprep.subr.mxu0 0.0
    %1234 = vmatpush1.msra.mxu0 %v656
    %1235 = vmatprep.subr.mxu0 0.0
    %1236 = vmatpush1.msra.mxu0 %v657
    %1237 = vmatprep.subr.mxu0 0.0
    %1238 = vmatpush1.msra.mxu0 %v658
    %1239 = vmatprep.subr.mxu0 0.0
    %1240 = vmatpush1.msra.mxu0 %v659
    %1241 = vmatprep.subr.mxu0 0.0
    %1242 = vmatpush1.msra.mxu0 0.0
    %1243 = vmatprep.subr.mxu0 0.0
    %1244 = vmatpush1.msra.mxu0 0.0
    %1245 = vmatprep.subr.mxu0 0.0
    %1246 = vmatpush1.msra.mxu0 0.0
    %1247 = vmatprep.subr.mxu0 0.0
    %1248 = vmatpush1.msra.mxu0 0.0
    %1249 = vmatprep.subr.mxu0 0.0
    %1250 = vmatpush1.msra.mxu0 0.0
    %1251 = vmatprep.subr.mxu0 0.0
    %1252 = vmatpush1.msra.mxu0 0.0
    %1253 = vmatprep.subr.mxu0 0.0
    %1254 = vmatpush1.msra.mxu0 0.0
    %1255 = vmatprep.subr.mxu0 0.0
    %1256 = vmatpush1.msra.mxu0 0.0
    %1257 = vmatprep.subr.mxu0 0.0
    %1258 = vmatpush1.msra.mxu0 0.0
    %1259 = vmatprep.subr.mxu0 0.0
    %1260 = vmatpush1.msra.mxu0 0.0
    %1261 = vmatprep.subr.mxu0 0.0
    %1262 = vmatpush1.msra.mxu0 0.0
    %1263 = vmatprep.subr.mxu0 0.0
    %1264 = vmatpush1.msra.mxu0 0.0
    %1265 = vmatprep.subr.mxu0 0.0
    %1266 = vmatpush1.msra.mxu0 0.0
    %1267 = vmatprep.subr.mxu0 0.0
    %1268 = vmatpush1.msra.mxu0 0.0
    %1269 = vmatprep.subr.mxu0 0.0
    %1270 = vmatpush1.msra.mxu0 0.0
    %1271 = vmatprep.subr.mxu0 0.0
    %1272 = vmatpush1.msra.mxu0 0.0
    %1273 = vmatprep.mubr.f32.mxu0 0.0
    %1274 = vmatmul.mubr.f32.gmra.mrb[0].mxu0 %v1207
    %v1275 = vpop.f32.mrb[0].mxu0
    %v1276 = vadd.f32 %v82, %v1275
    %v1277 = vpop.f32.mrb[0].mxu0
    %1278 = vmatprep.mubr.f32.mxu0 0.0
    %1279 = vmatmul.mubr.f32.gmra.mrb[0].mxu0 %v1208
    %v1280 = vpop.f32.mrb[0].mxu0
    %v1281 = vadd.f32 %v82, %v1280
    %v1282 = vpop.f32.mrb[0].mxu0
    %1283 = vdwg.mxu0
    %v1284 = vadd.f32 %v1048, %v1276
    %v1285 = vadd.f32 %v1049, %v1281
    %v1286 = vsub.f32 %v1284, %v1285
    %v1287 = vand.u32 2147483647, %v1286
    %v1288 = vadd.f32 %v1052, %v1287
    %1289 = vadd.xlane.f32.xlu0 %v1288
    %v1290 = vpop.xlane.xlu0 %1289
    %v1291 = vrot.slane %v1290, 4
    %v1292 = vadd.f32 %v1290, %v1291
    %v1293 = vrot.slane %v1292, 2
    %v1294 = vadd.f32 %v1292, %v1293
    %v1295 = vrot.slane %v1294, 1
    %v1296 = vadd.f32 %v1294, %v1295
    %s1297 = vtos %v1296
    %s1298 = smul.f32 %s1297, 0.005882353
    %s1299 = scalar_lea.smem [#allocation7], 0
    %1300 = sst [smem:[%s1299]] %s1298
    // Predicated region
    $region38: #{_hmr_loss_impl.1} parent=1 // pred_check
      _
    $region39: #{_hmr_loss_impl.1} parent=1 // pred_check_branch
      %1302 = sbr.rel (0) target = $region41
    $region40: #{_hmr_loss_impl.1} parent=1 // pred_region
      %s1304 = ssub.s32 16, 16
      %1305 = vsyncadd [#allocation4], %s1304
      %1308 = dma.smem_to_hbm [#allocation7], 16, %s7, [#allocation4]
    $region41: #{_hmr_loss_impl.1} parent=1 // pred_fallthru
      _
    // Predicated region
    $region42: #{_hmr_loss_impl.1} parent=1 // pred_check
      _
    $region43: #{_hmr_loss_impl.1} parent=1 // pred_check_branch
      %1310 = sbr.rel (0) target = $region45
    $region44: #{_hmr_loss_impl.1} parent=1 // pred_region
      %1311 = dma.done [#allocation4], 16
    $region45: #{_hmr_loss_impl.1} parent=1 // pred_fallthru
      _
    %1312 = sfence
    %1313 = vsyncpa [#allocation3], 1
    %1314 = vsyncpa [#allocation6], 1
    %1315 = vsyncpa [#allocation4], 1

</llo_original>
